<compile_context>
chip_gen: v5e
topology: v5e:2x2
jax: 0.10.0
libtpu: 0.0.40
codegen_flags: <defaults>
</compile_context>

<pallas_src>
import functools

import jax
import jax.numpy as jnp
from jax.experimental import pallas as pl
from jax.experimental.pallas import tpu as pltpu

LAYER_DIMS = [1024, 512, 128, 32, 16, 1]
BN_EPS = 1e-5
LRELU_SLOPE = 0.2

# Lane-padded (multiple-of-128) layout of the concatenated bias slab used by
# the fused kernel, so every in-kernel slice starts at a 128-lane boundary.
_PADDED_DIMS = [((d + 127) // 128) * 128 for d in LAYER_DIMS]  # 1024,512,128,128,128,128
_BIAS_OFF = [0]
for _d in _PADDED_DIMS:
    _BIAS_OFF.append(_BIAS_OFF[-1] + _d)
_BIAS_TOTAL = _BIAS_OFF[-1]  # 2048

# VMEM budgeting: stay well under v7x's 64 MiB physical VMEM (v5e/v6e have
# 128 MiB).  The fused all-in-VMEM path is only used when it fits comfortably.
VMEM_LIMIT_BYTES = 48 * 1024 * 1024
FUSED_VMEM_BUDGET_BYTES = 24 * 1024 * 1024


def _leaky_relu(y):
    return jnp.where(y >= 0, y, LRELU_SLOPE * y)


# ----------------------------------------------------------------------------
# Path 1: fully fused, whole batch resident in VMEM (small / medium B).
# ----------------------------------------------------------------------------
def _fused_kernel(x_ref, w1, w2, w3, w4, w5, w6row_ref, bias_ref, out_ref):
    """Entire discriminator forward in one kernel (single grid point)."""
    h = x_ref[...].astype(jnp.float32)

    for idx, w_ref in enumerate((w1, w2, w3, w4, w5)):
        b = bias_ref[:, _BIAS_OFF[idx]:_BIAS_OFF[idx] + LAYER_DIMS[idx]]
        # bf16 MXU matmul with f32 accumulation.
        h = jnp.dot(h.astype(jnp.bfloat16), w_ref[...],
                    preferred_element_type=jnp.float32) + b
        h = _leaky_relu(h)
        # Training-mode BatchNorm: batch mean, biased batch variance.
        mean = jnp.mean(h, axis=0, keepdims=True)
        var = jnp.mean((h - mean) * (h - mean), axis=0, keepdims=True)
        h = (h - mean) * jax.lax.rsqrt(var + BN_EPS)

    # Final Linear(16, 1) + Sigmoid as a VPU multiply + lane reduction
    # (avoids a 1-lane-wide, mostly-masked MXU pass).
    b6 = bias_ref[:, _BIAS_OFF[5]:_BIAS_OFF[5] + 1]
    logits = jnp.sum(h * w6row_ref[...], axis=-1, keepdims=True) + b6
    out_ref[...] = jax.nn.sigmoid(logits).astype(out_ref.dtype)


def _fused_cost_estimate(B, in_features):
    dims = [in_features] + LAYER_DIMS
    mac = sum(dims[i] * dims[i + 1] for i in range(len(LAYER_DIMS)))
    return pl.CostEstimate(
        flops=2 * B * mac,
        transcendentals=B + sum(LAYER_DIMS[:-1]),
        bytes_accessed=2 * mac + 4 * (B * (in_features + 1) + _BIAS_TOTAL))


def _concat_biases(params):
    segs = []
    for (_, b), padded in zip(params, _PADDED_DIMS):
        pad = padded - b.shape[1]
        segs.append(jnp.pad(b.astype(jnp.float32), ((0, 0), (0, pad))))
    return jnp.concatenate(segs, axis=1)  # [1, _BIAS_TOTAL]


def discriminator_forward_fused(x, params):
    """x: [B, in_features]. params: list of (w[in,out] bf16, b[1,out] f32)."""
    B, in_features = x.shape
    ws = [w for (w, _) in params[:-1]]                         # five bf16 matrices
    w6_row = params[-1][0].reshape(1, -1).astype(jnp.float32)  # [1, 16]
    bias_cat = _concat_biases(params)                          # [1, 2048]

    vmem = pl.BlockSpec(memory_space=pltpu.MemorySpace.VMEM)
    n_in = 1 + len(ws) + 2
    return pl.pallas_call(
        _fused_kernel,
        out_shape=jax.ShapeDtypeStruct((B, 1), jnp.float32),
        in_specs=[vmem] * n_in,
        out_specs=vmem,
        compiler_params=pltpu.CompilerParams(vmem_limit_bytes=VMEM_LIMIT_BYTES),
        cost_estimate=_fused_cost_estimate(B, in_features),
    )(x, *ws, w6_row, bias_cat)


# ----------------------------------------------------------------------------
# Path 2: batch-tiled, two-pass BatchNorm (large B).
#
# One pallas_call per Linear layer.  Each call streams batch tiles over an
# "arbitrary" grid axis while the layer weights stay resident in VMEM
# (constant index_map).  It writes the pre-BN activation tile in bf16 and
# accumulates per-feature sum / sum-of-squares in revisited [1, d_out] output
# blocks; the *next* layer's kernel derives mean / variance from those
# full-batch accumulators (1/B baked in at trace time) and applies the
# normalization, so training-mode BatchNorm semantics are exact.
# ----------------------------------------------------------------------------
def _hidden_layer_kernel(*refs, apply_input_bn, inv_b):
    if apply_input_bn:
        (sum_in, ssq_in, x_ref, w_ref, b_ref,
         y_ref, sum_out, ssq_out) = refs
    else:
        x_ref, w_ref, b_ref, y_ref, sum_out, ssq_out = refs

    x = x_ref[...].astype(jnp.float32)
    if apply_input_bn:
        mean = sum_in[...] * inv_b
        var = jnp.maximum(ssq_in[...] * inv_b - mean * mean, 0.0)
        x = (x - mean) * jax.lax.rsqrt(var + BN_EPS)

    y = jnp.dot(x.astype(jnp.bfloat16), w_ref[...],
                preferred_element_type=jnp.float32) + b_ref[...]
    y = _leaky_relu(y)

    # Store the streamed pre-BN activation in bf16 (halves HBM traffic on the
    # dominant tensors).  Accumulate the BatchNorm statistics from the
    # *rounded* values so the next layer's normalization is an exact
    # BatchNorm of what it actually reads.
    y_bf = y.astype(y_ref.dtype)
    y_ref[...] = y_bf
    y32 = y_bf.astype(jnp.float32)

    @pl.when(pl.program_id(0) == 0)
    def _():
        sum_out[...] = jnp.zeros_like(sum_out)
        ssq_out[...] = jnp.zeros_like(ssq_out)

    sum_out[...] += jnp.sum(y32, axis=0, keepdims=True)
    ssq_out[...] += jnp.sum(y32 * y32, axis=0, keepdims=True)


def _output_layer_kernel(sum_in, ssq_in, x_ref, wrow_ref, b_ref, o_ref, *, inv_b):
    mean = sum_in[...] * inv_b
    var = jnp.maximum(ssq_in[...] * inv_b - mean * mean, 0.0)
    x = (x_ref[...].astype(jnp.float32) - mean) * jax.lax.rsqrt(var + BN_EPS)
    logits = jnp.sum(x * wrow_ref[...], axis=-1, keepdims=True) + b_ref[...]
    o_ref[...] = jax.nn.sigmoid(logits).astype(o_ref.dtype)


def _hidden_cost_estimate(B, d_in, d_out, x_elem_bytes):
    return pl.CostEstimate(
        flops=2 * B * d_in * d_out,
        transcendentals=0,
        bytes_accessed=(2 * d_in * d_out            # bf16 weights (resident)
                        + x_elem_bytes * B * d_in   # streamed input activations
                        + 2 * B * d_out             # bf16 streamed output
                        + 4 * (3 * d_out + 2 * d_in)))


def _output_cost_estimate(B, d_in):
    return pl.CostEstimate(
        flops=2 * B * d_in,
        transcendentals=B,
        bytes_accessed=2 * B * d_in + 4 * (B + 3 * d_in + 1))


def _pick_tile_b(B, in_features, target=512):
    """Largest multiple of 8 that divides B, <= target, and keeps the
    double-buffered f32 first-layer input tile under ~8 MiB (falls back to B)."""
    cap = max(8, ((8 * 1024 * 1024) // (8 * max(int(in_features), 1))) // 8 * 8)
    target = min(target, cap)
    if B <= target:
        return B
    t = (min(target, B) // 8) * 8
    while t >= 8:
        if B % t == 0:
            return t
        t -= 8
    return B


def discriminator_forward_tiled(x, params, tile_b=None):
    B, in_features = x.shape
    if tile_b is None:
        tile_b = _pick_tile_b(B, in_features)
    if tile_b != B:
        assert B % tile_b == 0 and tile_b % 8 == 0, (
            "tile_b must be a multiple of 8 that divides the batch size")
    n_tiles = B // tile_b
    inv_b = 1.0 / B   # compile-time constant baked into the kernels

    h = x
    stats = None  # (sum, sum-of-squares) of the previous layer's stored pre-BN activation
    for l in range(len(params) - 1):
        w, b = params[l]
        d_in, d_out = int(w.shape[0]), int(w.shape[1])
        apply_bn = stats is not None

        inputs, in_specs = [], []
        if apply_bn:
            inputs += list(stats)
            in_specs += [pl.BlockSpec((1, d_in), lambda i: (0, 0)),
                         pl.BlockSpec((1, d_in), lambda i: (0, 0))]
        inputs += [h, w, b]
        in_specs += [
            pl.BlockSpec((tile_b, d_in), lambda i: (i, 0)),   # batch tile streams
            pl.BlockSpec((d_in, d_out), lambda i: (0, 0)),    # weights resident
            pl.BlockSpec((1, d_out), lambda i: (0, 0)),
        ]
        out_shape = (jax.ShapeDtypeStruct((B, d_out), jnp.bfloat16),
                     jax.ShapeDtypeStruct((1, d_out), jnp.float32),
                     jax.ShapeDtypeStruct((1, d_out), jnp.float32))
        out_specs = (pl.BlockSpec((tile_b, d_out), lambda i: (i, 0)),
                     pl.BlockSpec((1, d_out), lambda i: (0, 0)),   # sum accumulator
                     pl.BlockSpec((1, d_out), lambda i: (0, 0)))   # sumsq accumulator

        x_elem_bytes = 4 if l == 0 else 2
        y, s, ssq = pl.pallas_call(
            functools.partial(_hidden_layer_kernel,
                              apply_input_bn=apply_bn, inv_b=inv_b),
            grid=(n_tiles,),
            in_specs=in_specs,
            out_specs=out_specs,
            out_shape=out_shape,
            compiler_params=pltpu.CompilerParams(
                dimension_semantics=("arbitrary",),
                vmem_limit_bytes=VMEM_LIMIT_BYTES),
            cost_estimate=_hidden_cost_estimate(B, d_in, d_out, x_elem_bytes),
        )(*inputs)

        h, stats = y, (s, ssq)

    # Final Linear(16, 1) + Sigmoid (input normalized with layer-5 statistics).
    w6, b6 = params[-1]
    d_in = int(w6.shape[0])
    w6_row = w6.reshape(1, -1).astype(jnp.float32)
    s, ssq = stats
    out = pl.pallas_call(
        functools.partial(_output_layer_kernel, inv_b=inv_b),
        grid=(n_tiles,),
        in_specs=[pl.BlockSpec((1, d_in), lambda i: (0, 0)),
                  pl.BlockSpec((1, d_in), lambda i: (0, 0)),
                  pl.BlockSpec((tile_b, d_in), lambda i: (i, 0)),
                  pl.BlockSpec((1, d_in), lambda i: (0, 0)),
                  pl.BlockSpec((1, 1), lambda i: (0, 0))],
        out_specs=pl.BlockSpec((tile_b, 1), lambda i: (i, 0)),
        out_shape=jax.ShapeDtypeStruct((B, 1), jnp.float32),
        compiler_params=pltpu.CompilerParams(
            dimension_semantics=("parallel",),
            vmem_limit_bytes=VMEM_LIMIT_BYTES),
        cost_estimate=_output_cost_estimate(B, d_in),
    )(s, ssq, h, w6_row, b6)
    return out


# ----------------------------------------------------------------------------
# Dispatcher.
# ----------------------------------------------------------------------------
def _fused_vmem_bytes(B, in_features):
    dims = [in_features] + LAYER_DIMS
    weight_bytes = 2 * sum(dims[i] * dims[i + 1] for i in range(len(LAYER_DIMS)))
    act_bytes = 4 * B * (in_features + 2 * LAYER_DIMS[0])   # x + widest live activations
    return weight_bytes + act_bytes + 4 * _BIAS_TOTAL


def discriminator_forward(x, params):
    B, in_features = x.shape
    if _fused_vmem_bytes(B, in_features) <= FUSED_VMEM_BUDGET_BYTES:
        return discriminator_forward_fused(x, params)
    return discriminator_forward_tiled(x, params)


# ----------------------------------------------------------------------------
# Parameters and pure-JAX reference.
# ----------------------------------------------------------------------------
def init_params(key, in_features):
    """Synthetic init (the module's `init_weights` is not defined in the spec):
    N(0, 0.02) weights stored transposed as bf16 [in, out], N(0, 0.01) f32
    biases stored as [1, out]."""
    params = []
    dims = [in_features] + LAYER_DIMS
    for i in range(len(LAYER_DIMS)):
        key, kw, kb = jax.random.split(key, 3)
        w = (0.02 * jax.random.normal(kw, (dims[i], dims[i + 1]),
                                      dtype=jnp.float32)).astype(jnp.bfloat16)
        b = 0.01 * jax.random.normal(kb, (1, dims[i + 1]), dtype=jnp.float32)
        params.append((w, b))
    return params


def reference_forward(x, params):
    """Pure-JAX reference mirroring PyTorch semantics (training-mode
    BatchNorm, eps=1e-5, identity affine) evaluated in the kernels' mixed
    precision: bf16 weights & matmul inputs, f32 accumulation and f32
    LeakyReLU / BatchNorm / Sigmoid math."""
    h = x.astype(jnp.float32)
    n = len(params)
    for i, (w, b) in enumerate(params):
        if i < n - 1:
            z = jnp.dot(h.astype(jnp.bfloat16), w,
                        preferred_element_type=jnp.float32) + b
            z = jnp.where(z >= 0, z, LRELU_SLOPE * z)
            mean = jnp.mean(z, axis=0, keepdims=True)
            var = jnp.mean((z - mean) ** 2, axis=0, keepdims=True)
            h = (z - mean) * jax.lax.rsqrt(var + BN_EPS)
        else:
            z = jnp.dot(h, w.astype(jnp.float32)) + b
            h = jax.nn.sigmoid(z)
    return h


if __name__ == "__main__":
    key = jax.random.PRNGKey(0)
    in_features = 64
    k_x1, k_x2, k_p = jax.random.split(key, 3)
    params = init_params(k_p, in_features)

    # Small batch -> fused single-kernel path (everything VMEM-resident).
    x_small = jax.random.normal(k_x1, (8, in_features), dtype=jnp.float32)
    out_small = jax.block_until_ready(discriminator_forward(x_small, params))
    ref_small = reference_forward(x_small, params)
    assert out_small.shape == (8, 1)
    # 5e-3 tolerance absorbs bf16 rounding-boundary effects across the 5 layers.
    assert jnp.allclose(out_small, ref_small, atol=5e-3, rtol=5e-3), (
        "fused path mismatch: max |diff| = "
        f"{float(jnp.max(jnp.abs(out_small - ref_small)))}")

    # Larger batch through the batch-tiled two-pass-BatchNorm path
    # (weights resident across batch tiles, exact full-batch BN statistics,
    # bf16 inter-layer activation streaming).
    x_large = jax.random.normal(k_x2, (32, in_features), dtype=jnp.float32)
    out_large = jax.block_until_ready(
        discriminator_forward_tiled(x_large, params, tile_b=8))
    ref_large = reference_forward(x_large, params)
    assert out_large.shape == (32, 1)
    assert jnp.allclose(out_large, ref_large, atol=5e-3, rtol=5e-3), (
        "tiled path mismatch: max |diff| = "
        f"{float(jnp.max(jnp.abs(out_large - ref_large)))}")

    print("KERNEL_OK")
</pallas_src>

<mosaic_0001>
module attributes {stable_mosaic.version = 11 : i64} {
  func.func @_fused_kernel(%arg0: memref<8x64xf32, #tpu.memory_space<vmem>>, %arg1: memref<64x1024xbf16, #tpu.memory_space<vmem>>, %arg2: memref<1024x512xbf16, #tpu.memory_space<vmem>>, %arg3: memref<512x128xbf16, #tpu.memory_space<vmem>>, %arg4: memref<128x32xbf16, #tpu.memory_space<vmem>>, %arg5: memref<32x16xbf16, #tpu.memory_space<vmem>>, %arg6: memref<1x16xf32, #tpu.memory_space<vmem>>, %arg7: memref<1x2048xf32, #tpu.memory_space<vmem>>, %arg8: memref<8x1xf32, #tpu.memory_space<vmem>>) attributes {dimension_semantics = [], scalar_prefetch = 0 : i64, scratch_operands = 0 : i64, tpu.core_type = #tpu.core_type<tc>} {
    %c0 = arith.constant 0 : index
    %c0_0 = arith.constant 0 : index
    %0 = vector.load %arg0[%c0, %c0_0] : memref<8x64xf32, #tpu.memory_space<vmem>>, vector<8x64xf32>
    %c0_1 = arith.constant 0 : index
    %c0_2 = arith.constant 0 : index
    %1 = vector.load %arg7[%c0_1, %c0_2] : memref<1x2048xf32, #tpu.memory_space<vmem>>, vector<1x1024xf32>
    %2 = arith.truncf %0 : vector<8x64xf32> to vector<8x64xbf16>
    %c0_3 = arith.constant 0 : index
    %c0_4 = arith.constant 0 : index
    %3 = vector.load %arg1[%c0_3, %c0_4] : memref<64x1024xbf16, #tpu.memory_space<vmem>>, vector<64x1024xbf16>
    %cst = arith.constant dense<0.000000e+00> : vector<8x1024xf32>
    %4 = tpu.matmul %2, %3, %cst {dimension_numbers = #tpu.dot_dimension_numbers<[1], [0], [0], [1], [0, 0, 1, 1], [], []>} : vector<8x64xbf16>, vector<64x1024xbf16>, vector<8x1024xf32> -> vector<8x1024xf32>
    %5 = vector.broadcast %1 : vector<1x1024xf32> to vector<8x1024xf32>
    %6 = arith.addf %4, %5 : vector<8x1024xf32>
    %cst_5 = arith.constant 0.000000e+00 : f32
    %7 = vector.broadcast %cst_5 : f32 to vector<8x1024xf32>
    %8 = arith.cmpf oge, %6, %7 : vector<8x1024xf32>
    %cst_6 = arith.constant 2.000000e-01 : f32
    %9 = vector.broadcast %cst_6 : f32 to vector<8x1024xf32>
    %10 = arith.mulf %9, %6 : vector<8x1024xf32>
    %11 = arith.select %8, %6, %10 : vector<8x1024xi1>, vector<8x1024xf32>
    %cst_7 = arith.constant dense<0.000000e+00> : vector<1024xf32>
    %12 = vector.multi_reduction <add>, %11, %cst_7 [0] : vector<8x1024xf32> to vector<1024xf32>
    %13 = vector.shape_cast %12 : vector<1024xf32> to vector<1x1024xf32>
    %cst_8 = arith.constant 8.000000e+00 : f32
    %14 = vector.broadcast %cst_8 : f32 to vector<1x1024xf32>
    %15 = arith.divf %13, %14 : vector<1x1024xf32>
    %16 = vector.broadcast %15 : vector<1x1024xf32> to vector<8x1024xf32>
    %17 = arith.subf %11, %16 : vector<8x1024xf32>
    %18 = vector.broadcast %15 : vector<1x1024xf32> to vector<8x1024xf32>
    %19 = arith.subf %11, %18 : vector<8x1024xf32>
    %20 = arith.mulf %17, %19 : vector<8x1024xf32>
    %cst_9 = arith.constant dense<0.000000e+00> : vector<1024xf32>
    %21 = vector.multi_reduction <add>, %20, %cst_9 [0] : vector<8x1024xf32> to vector<1024xf32>
    %22 = vector.shape_cast %21 : vector<1024xf32> to vector<1x1024xf32>
    %cst_10 = arith.constant 8.000000e+00 : f32
    %23 = vector.broadcast %cst_10 : f32 to vector<1x1024xf32>
    %24 = arith.divf %22, %23 : vector<1x1024xf32>
    %25 = vector.broadcast %15 : vector<1x1024xf32> to vector<8x1024xf32>
    %26 = arith.subf %11, %25 : vector<8x1024xf32>
    %cst_11 = arith.constant 9.99999974E-6 : f32
    %27 = vector.broadcast %cst_11 : f32 to vector<1x1024xf32>
    %28 = arith.addf %24, %27 : vector<1x1024xf32>
    %29 = math.rsqrt %28 : vector<1x1024xf32>
    %30 = vector.broadcast %29 : vector<1x1024xf32> to vector<8x1024xf32>
    %31 = arith.mulf %26, %30 : vector<8x1024xf32>
    %c0_12 = arith.constant 0 : index
    %c1024 = arith.constant 1024 : index
    %32 = vector.load %arg7[%c0_12, %c1024] : memref<1x2048xf32, #tpu.memory_space<vmem>>, vector<1x512xf32>
    %33 = arith.truncf %31 : vector<8x1024xf32> to vector<8x1024xbf16>
    %c0_13 = arith.constant 0 : index
    %c0_14 = arith.constant 0 : index
    %34 = vector.load %arg2[%c0_13, %c0_14] : memref<1024x512xbf16, #tpu.memory_space<vmem>>, vector<1024x512xbf16>
    %cst_15 = arith.constant dense<0.000000e+00> : vector<8x512xf32>
    %35 = tpu.matmul %33, %34, %cst_15 {dimension_numbers = #tpu.dot_dimension_numbers<[1], [0], [0], [1], [0, 0, 1, 1], [], []>} : vector<8x1024xbf16>, vector<1024x512xbf16>, vector<8x512xf32> -> vector<8x512xf32>
    %36 = vector.broadcast %32 : vector<1x512xf32> to vector<8x512xf32>
    %37 = arith.addf %35, %36 : vector<8x512xf32>
    %cst_16 = arith.constant 0.000000e+00 : f32
    %38 = vector.broadcast %cst_16 : f32 to vector<8x512xf32>
    %39 = arith.cmpf oge, %37, %38 : vector<8x512xf32>
    %cst_17 = arith.constant 2.000000e-01 : f32
    %40 = vector.broadcast %cst_17 : f32 to vector<8x512xf32>
    %41 = arith.mulf %40, %37 : vector<8x512xf32>
    %42 = arith.select %39, %37, %41 : vector<8x512xi1>, vector<8x512xf32>
    %cst_18 = arith.constant dense<0.000000e+00> : vector<512xf32>
    %43 = vector.multi_reduction <add>, %42, %cst_18 [0] : vector<8x512xf32> to vector<512xf32>
    %44 = vector.shape_cast %43 : vector<512xf32> to vector<1x512xf32>
    %cst_19 = arith.constant 8.000000e+00 : f32
    %45 = vector.broadcast %cst_19 : f32 to vector<1x512xf32>
    %46 = arith.divf %44, %45 : vector<1x512xf32>
    %47 = vector.broadcast %46 : vector<1x512xf32> to vector<8x512xf32>
    %48 = arith.subf %42, %47 : vector<8x512xf32>
    %49 = vector.broadcast %46 : vector<1x512xf32> to vector<8x512xf32>
    %50 = arith.subf %42, %49 : vector<8x512xf32>
    %51 = arith.mulf %48, %50 : vector<8x512xf32>
    %cst_20 = arith.constant dense<0.000000e+00> : vector<512xf32>
    %52 = vector.multi_reduction <add>, %51, %cst_20 [0] : vector<8x512xf32> to vector<512xf32>
    %53 = vector.shape_cast %52 : vector<512xf32> to vector<1x512xf32>
    %cst_21 = arith.constant 8.000000e+00 : f32
    %54 = vector.broadcast %cst_21 : f32 to vector<1x512xf32>
    %55 = arith.divf %53, %54 : vector<1x512xf32>
    %56 = vector.broadcast %46 : vector<1x512xf32> to vector<8x512xf32>
    %57 = arith.subf %42, %56 : vector<8x512xf32>
    %cst_22 = arith.constant 9.99999974E-6 : f32
    %58 = vector.broadcast %cst_22 : f32 to vector<1x512xf32>
    %59 = arith.addf %55, %58 : vector<1x512xf32>
    %60 = math.rsqrt %59 : vector<1x512xf32>
    %61 = vector.broadcast %60 : vector<1x512xf32> to vector<8x512xf32>
    %62 = arith.mulf %57, %61 : vector<8x512xf32>
    %c0_23 = arith.constant 0 : index
    %c1536 = arith.constant 1536 : index
    %63 = vector.load %arg7[%c0_23, %c1536] : memref<1x2048xf32, #tpu.memory_space<vmem>>, vector<1x128xf32>
    %64 = arith.truncf %62 : vector<8x512xf32> to vector<8x512xbf16>
    %c0_24 = arith.constant 0 : index
    %c0_25 = arith.constant 0 : index
    %65 = vector.load %arg3[%c0_24, %c0_25] : memref<512x128xbf16, #tpu.memory_space<vmem>>, vector<512x128xbf16>
    %cst_26 = arith.constant dense<0.000000e+00> : vector<8x128xf32>
    %66 = tpu.matmul %64, %65, %cst_26 {dimension_numbers = #tpu.dot_dimension_numbers<[1], [0], [0], [1], [0, 0, 1, 1], [], []>} : vector<8x512xbf16>, vector<512x128xbf16>, vector<8x128xf32> -> vector<8x128xf32>
    %67 = vector.broadcast %63 : vector<1x128xf32> to vector<8x128xf32>
    %68 = arith.addf %66, %67 : vector<8x128xf32>
    %cst_27 = arith.constant 0.000000e+00 : f32
    %69 = vector.broadcast %cst_27 : f32 to vector<8x128xf32>
    %70 = arith.cmpf oge, %68, %69 : vector<8x128xf32>
    %cst_28 = arith.constant 2.000000e-01 : f32
    %71 = vector.broadcast %cst_28 : f32 to vector<8x128xf32>
    %72 = arith.mulf %71, %68 : vector<8x128xf32>
    %73 = arith.select %70, %68, %72 : vector<8x128xi1>, vector<8x128xf32>
    %cst_29 = arith.constant dense<0.000000e+00> : vector<128xf32>
    %74 = vector.multi_reduction <add>, %73, %cst_29 [0] : vector<8x128xf32> to vector<128xf32>
    %75 = vector.shape_cast %74 : vector<128xf32> to vector<1x128xf32>
    %cst_30 = arith.constant 8.000000e+00 : f32
    %76 = vector.broadcast %cst_30 : f32 to vector<1x128xf32>
    %77 = arith.divf %75, %76 : vector<1x128xf32>
    %78 = vector.broadcast %77 : vector<1x128xf32> to vector<8x128xf32>
    %79 = arith.subf %73, %78 : vector<8x128xf32>
    %80 = vector.broadcast %77 : vector<1x128xf32> to vector<8x128xf32>
    %81 = arith.subf %73, %80 : vector<8x128xf32>
    %82 = arith.mulf %79, %81 : vector<8x128xf32>
    %cst_31 = arith.constant dense<0.000000e+00> : vector<128xf32>
    %83 = vector.multi_reduction <add>, %82, %cst_31 [0] : vector<8x128xf32> to vector<128xf32>
    %84 = vector.shape_cast %83 : vector<128xf32> to vector<1x128xf32>
    %cst_32 = arith.constant 8.000000e+00 : f32
    %85 = vector.broadcast %cst_32 : f32 to vector<1x128xf32>
    %86 = arith.divf %84, %85 : vector<1x128xf32>
    %87 = vector.broadcast %77 : vector<1x128xf32> to vector<8x128xf32>
    %88 = arith.subf %73, %87 : vector<8x128xf32>
    %cst_33 = arith.constant 9.99999974E-6 : f32
    %89 = vector.broadcast %cst_33 : f32 to vector<1x128xf32>
    %90 = arith.addf %86, %89 : vector<1x128xf32>
    %91 = math.rsqrt %90 : vector<1x128xf32>
    %92 = vector.broadcast %91 : vector<1x128xf32> to vector<8x128xf32>
    %93 = arith.mulf %88, %92 : vector<8x128xf32>
    %c0_34 = arith.constant 0 : index
    %c1664 = arith.constant 1664 : index
    %94 = vector.load %arg7[%c0_34, %c1664] : memref<1x2048xf32, #tpu.memory_space<vmem>>, vector<1x32xf32>
    %95 = arith.truncf %93 : vector<8x128xf32> to vector<8x128xbf16>
    %c0_35 = arith.constant 0 : index
    %c0_36 = arith.constant 0 : index
    %96 = vector.load %arg4[%c0_35, %c0_36] : memref<128x32xbf16, #tpu.memory_space<vmem>>, vector<128x32xbf16>
    %cst_37 = arith.constant dense<0.000000e+00> : vector<8x32xf32>
    %97 = tpu.matmul %95, %96, %cst_37 {dimension_numbers = #tpu.dot_dimension_numbers<[1], [0], [0], [1], [0, 0, 1, 1], [], []>} : vector<8x128xbf16>, vector<128x32xbf16>, vector<8x32xf32> -> vector<8x32xf32>
    %98 = vector.broadcast %94 : vector<1x32xf32> to vector<8x32xf32>
    %99 = arith.addf %97, %98 : vector<8x32xf32>
    %cst_38 = arith.constant 0.000000e+00 : f32
    %100 = vector.broadcast %cst_38 : f32 to vector<8x32xf32>
    %101 = arith.cmpf oge, %99, %100 : vector<8x32xf32>
    %cst_39 = arith.constant 2.000000e-01 : f32
    %102 = vector.broadcast %cst_39 : f32 to vector<8x32xf32>
    %103 = arith.mulf %102, %99 : vector<8x32xf32>
    %104 = arith.select %101, %99, %103 : vector<8x32xi1>, vector<8x32xf32>
    %cst_40 = arith.constant dense<0.000000e+00> : vector<32xf32>
    %105 = vector.multi_reduction <add>, %104, %cst_40 [0] : vector<8x32xf32> to vector<32xf32>
    %106 = vector.shape_cast %105 : vector<32xf32> to vector<1x32xf32>
    %cst_41 = arith.constant 8.000000e+00 : f32
    %107 = vector.broadcast %cst_41 : f32 to vector<1x32xf32>
    %108 = arith.divf %106, %107 : vector<1x32xf32>
    %109 = vector.broadcast %108 : vector<1x32xf32> to vector<8x32xf32>
    %110 = arith.subf %104, %109 : vector<8x32xf32>
    %111 = vector.broadcast %108 : vector<1x32xf32> to vector<8x32xf32>
    %112 = arith.subf %104, %111 : vector<8x32xf32>
    %113 = arith.mulf %110, %112 : vector<8x32xf32>
    %cst_42 = arith.constant dense<0.000000e+00> : vector<32xf32>
    %114 = vector.multi_reduction <add>, %113, %cst_42 [0] : vector<8x32xf32> to vector<32xf32>
    %115 = vector.shape_cast %114 : vector<32xf32> to vector<1x32xf32>
    %cst_43 = arith.constant 8.000000e+00 : f32
    %116 = vector.broadcast %cst_43 : f32 to vector<1x32xf32>
    %117 = arith.divf %115, %116 : vector<1x32xf32>
    %118 = vector.broadcast %108 : vector<1x32xf32> to vector<8x32xf32>
    %119 = arith.subf %104, %118 : vector<8x32xf32>
    %cst_44 = arith.constant 9.99999974E-6 : f32
    %120 = vector.broadcast %cst_44 : f32 to vector<1x32xf32>
    %121 = arith.addf %117, %120 : vector<1x32xf32>
    %122 = math.rsqrt %121 : vector<1x32xf32>
    %123 = vector.broadcast %122 : vector<1x32xf32> to vector<8x32xf32>
    %124 = arith.mulf %119, %123 : vector<8x32xf32>
    %c0_45 = arith.constant 0 : index
    %c1792 = arith.constant 1792 : index
    %125 = vector.load %arg7[%c0_45, %c1792] : memref<1x2048xf32, #tpu.memory_space<vmem>>, vector<1x16xf32>
    %126 = arith.truncf %124 : vector<8x32xf32> to vector<8x32xbf16>
    %c0_46 = arith.constant 0 : index
    %c0_47 = arith.constant 0 : index
    %127 = vector.load %arg5[%c0_46, %c0_47] : memref<32x16xbf16, #tpu.memory_space<vmem>>, vector<32x16xbf16>
    %cst_48 = arith.constant dense<0.000000e+00> : vector<8x16xf32>
    %128 = tpu.matmul %126, %127, %cst_48 {dimension_numbers = #tpu.dot_dimension_numbers<[1], [0], [0], [1], [0, 0, 1, 1], [], []>} : vector<8x32xbf16>, vector<32x16xbf16>, vector<8x16xf32> -> vector<8x16xf32>
    %129 = vector.broadcast %125 : vector<1x16xf32> to vector<8x16xf32>
    %130 = arith.addf %128, %129 : vector<8x16xf32>
    %cst_49 = arith.constant 0.000000e+00 : f32
    %131 = vector.broadcast %cst_49 : f32 to vector<8x16xf32>
    %132 = arith.cmpf oge, %130, %131 : vector<8x16xf32>
    %cst_50 = arith.constant 2.000000e-01 : f32
    %133 = vector.broadcast %cst_50 : f32 to vector<8x16xf32>
    %134 = arith.mulf %133, %130 : vector<8x16xf32>
    %135 = arith.select %132, %130, %134 : vector<8x16xi1>, vector<8x16xf32>
    %cst_51 = arith.constant dense<0.000000e+00> : vector<16xf32>
    %136 = vector.multi_reduction <add>, %135, %cst_51 [0] : vector<8x16xf32> to vector<16xf32>
    %137 = vector.shape_cast %136 : vector<16xf32> to vector<1x16xf32>
    %cst_52 = arith.constant 8.000000e+00 : f32
    %138 = vector.broadcast %cst_52 : f32 to vector<1x16xf32>
    %139 = arith.divf %137, %138 : vector<1x16xf32>
    %140 = vector.broadcast %139 : vector<1x16xf32> to vector<8x16xf32>
    %141 = arith.subf %135, %140 : vector<8x16xf32>
    %142 = vector.broadcast %139 : vector<1x16xf32> to vector<8x16xf32>
    %143 = arith.subf %135, %142 : vector<8x16xf32>
    %144 = arith.mulf %141, %143 : vector<8x16xf32>
    %cst_53 = arith.constant dense<0.000000e+00> : vector<16xf32>
    %145 = vector.multi_reduction <add>, %144, %cst_53 [0] : vector<8x16xf32> to vector<16xf32>
    %146 = vector.shape_cast %145 : vector<16xf32> to vector<1x16xf32>
    %cst_54 = arith.constant 8.000000e+00 : f32
    %147 = vector.broadcast %cst_54 : f32 to vector<1x16xf32>
    %148 = arith.divf %146, %147 : vector<1x16xf32>
    %149 = vector.broadcast %139 : vector<1x16xf32> to vector<8x16xf32>
    %150 = arith.subf %135, %149 : vector<8x16xf32>
    %cst_55 = arith.constant 9.99999974E-6 : f32
    %151 = vector.broadcast %cst_55 : f32 to vector<1x16xf32>
    %152 = arith.addf %148, %151 : vector<1x16xf32>
    %153 = math.rsqrt %152 : vector<1x16xf32>
    %154 = vector.broadcast %153 : vector<1x16xf32> to vector<8x16xf32>
    %155 = arith.mulf %150, %154 : vector<8x16xf32>
    %c0_56 = arith.constant 0 : index
    %c1920 = arith.constant 1920 : index
    %156 = vector.load %arg7[%c0_56, %c1920] : memref<1x2048xf32, #tpu.memory_space<vmem>>, vector<1x1xf32>
    %c0_57 = arith.constant 0 : index
    %c0_58 = arith.constant 0 : index
    %157 = vector.load %arg6[%c0_57, %c0_58] : memref<1x16xf32, #tpu.memory_space<vmem>>, vector<1x16xf32>
    %158 = vector.broadcast %157 : vector<1x16xf32> to vector<8x16xf32>
    %159 = arith.mulf %155, %158 : vector<8x16xf32>
    %cst_59 = arith.constant dense<0.000000e+00> : vector<8xf32>
    %160 = vector.multi_reduction <add>, %159, %cst_59 [1] : vector<8x16xf32> to vector<8xf32>
    %161 = vector.shape_cast %160 : vector<8xf32> to vector<8x1xf32>
    %162 = vector.broadcast %156 : vector<1x1xf32> to vector<8x1xf32>
    %163 = arith.addf %161, %162 : vector<8x1xf32>
    %164 = arith.negf %163 : vector<8x1xf32>
    %165 = math.exp %164 : vector<8x1xf32>
    %cst_60 = arith.constant 1.000000e+00 : f32
    %166 = vector.broadcast %cst_60 : f32 to vector<8x1xf32>
    %167 = arith.addf %166, %165 : vector<8x1xf32>
    %168 = arith.divf %166, %167 : vector<8x1xf32>
    %c0_61 = arith.constant 0 : index
    %c0_62 = arith.constant 0 : index
    %169 = vector.load %arg8[%c0_61, %c0_62] : memref<8x1xf32, #tpu.memory_space<vmem>>, vector<8x1xf32>
    tpu.vector_store %arg8[%c0_61, %c0_62], %168 {strides = array<i32>} : memref<8x1xf32, #tpu.memory_space<vmem>>, vector<8x1xf32>,
    return
  }
}

</mosaic_0001>

<llo_original>
// kernel: tpu_custom_call.1
$region0: #{tpu_custom_call.1}
  #allocation0 [shape = 'u32[]', space=smem, size = 0x4, offset = 0x4, fixed_abs, tag = 'smem constant byte address 0x4 - core index']
  #allocation1 [shape = 'u32[72,128]{1,0:T(1,128)}', space=vmem, size = 0x9000, scoped, tag = 'internal scratch']
  %s0 = inlined_call_operand.vmem [shape: f32[8,64], index: 0, kind: input, shape index: {}]
  %s1 = inlined_call_operand.hbm [shape: bf16[64,1024], index: 1, kind: input, shape index: {}]
  %s2 = inlined_call_operand.hbm [shape: bf16[1024,512], index: 2, kind: input, shape index: {}]
  %s3 = inlined_call_operand.hbm [shape: bf16[512,128], index: 3, kind: input, shape index: {}]
  %s4 = inlined_call_operand.vmem [shape: bf16[128,32], index: 4, kind: input, shape index: {}]
  %s5 = inlined_call_operand.vmem [shape: bf16[32,16], index: 5, kind: input, shape index: {}]
  %s6 = inlined_call_operand.vmem [shape: f32[1,16], index: 6, kind: input, shape index: {}]
  %s7 = inlined_call_operand.vmem [shape: f32[1,2048], index: 7, kind: input, shape index: {}]
  %s8 = inlined_call_operand.vmem [shape: f32[8,1], index: 8, kind: output, shape index: {}]
  %s9 = sld [smem:[#allocation0]]
  $region54: #{tpu_custom_call.1} parent=0
    _
  %s11 = ssub.s32 1, %s9
  %s12 = scalar_select 0, %s11, %s9
  $region1: #{tpu_custom_call.1} parent=0
    #allocation2 [shape = 'u8[131072]{0}', space=vmem, size = 0x20000, scoped, tag = 'input window, operand 1, single buffered']
    #allocation3 [shape = 's32[1]{0}', space=sflag, size = 0x4, scoped, tag = 'scoped memory for tpu_custom_call.1']
    #allocation4 [shape = 'u8[1048576]{0}', space=vmem, size = 0x100000, scoped, tag = 'input window, operand 2, single buffered']
    #allocation5 [shape = 's32[1]{0}', space=sflag, size = 0x4, scoped, tag = 'scoped memory for tpu_custom_call.1']
    #allocation6 [shape = 'u8[131072]{0}', space=vmem, size = 0x20000, scoped, tag = 'input window, operand 3, single buffered']
    %13 = vsyncpa [#allocation3], 0
    %14 = vsyncpa [#allocation5], 0
    // Predicated region
    $region2: #{tpu_custom_call.1} parent=1 // pred_check
      _
    $region3: #{tpu_custom_call.1} parent=1 // pred_check_branch
      %16 = sbr.rel (0) target = $region5
    $region4: #{tpu_custom_call.1} parent=1 // pred_region
      _
    $region5: #{tpu_custom_call.1} parent=1 // pred_fallthru
      _
    // Predicated region
    $region6: #{tpu_custom_call.1} parent=1 // pred_check
      _
    $region7: #{tpu_custom_call.1} parent=1 // pred_check_branch
      %18 = sbr.rel (0) target = $region9
    $region8: #{tpu_custom_call.1} parent=1 // pred_region
      %20 = vsyncadd [#allocation3], 0
      %s21 = sshll.u32 %s1, 4
      %s22 = int_to_ptr.hbm [resolvable:$true] %s21
      %s23 = sshll.u32 [#allocation2], 4
      %s24 = int_to_ptr.vmem [resolvable:$true] %s23
      %29 = dma.hbm_to_vmem [thread:$0]  %s22, 4096, %s24, [#allocation3], 512, 512, 32
    $region9: #{tpu_custom_call.1} parent=1 // pred_fallthru
      _
    // Predicated region
    $region10: #{tpu_custom_call.1} parent=1 // pred_check
      _
    $region11: #{tpu_custom_call.1} parent=1 // pred_check_branch
      %31 = sbr.rel (0) target = $region13
    $region12: #{tpu_custom_call.1} parent=1 // pred_region
      %33 = vsyncadd [#allocation5], 0
      %s34 = sshll.u32 %s2, 4
      %s35 = int_to_ptr.hbm [resolvable:$true] %s34
      %s36 = sshll.u32 [#allocation4], 4
      %s37 = int_to_ptr.vmem [resolvable:$true] %s36
      %42 = dma.hbm_to_vmem [thread:$0]  %s35, 32768, %s37, [#allocation5], 256, 256, 16
    $region13: #{tpu_custom_call.1} parent=1 // pred_fallthru
      _
    // Predicated region
    $region14: #{tpu_custom_call.1} parent=1 // pred_check
      _
    $region15: #{tpu_custom_call.1} parent=1 // pred_check_branch
      %44 = sbr.rel (0) target = $region17
    $region16: #{tpu_custom_call.1} parent=1 // pred_region
      %46 = vsyncadd [#allocation5], 0
      %s47 = sshll.u32 %s3, 4
      %s48 = int_to_ptr.hbm [resolvable:$true] %s47
      %s49 = sshll.u32 [#allocation6], 4
      %s50 = int_to_ptr.vmem [resolvable:$true] %s49
      %55 = dma.hbm_to_vmem [thread:$0]  %s48, 4096, %s50, [#allocation5], 64, 64, 4
    $region17: #{tpu_custom_call.1} parent=1 // pred_fallthru
      _
    // Predicated region
    $region18: #{tpu_custom_call.1} parent=1 // pred_check
      _
    $region19: #{tpu_custom_call.1} parent=1 // pred_check_branch
      %57 = sbr.rel (0) target = $region21
    $region20: #{tpu_custom_call.1} parent=1 // pred_region
      _
    $region21: #{tpu_custom_call.1} parent=1 // pred_fallthru
      _
    // Predicated region
    $region22: #{tpu_custom_call.1} parent=1 // pred_check
      _
    $region23: #{tpu_custom_call.1} parent=1 // pred_check_branch
      %59 = sbr.rel (0) target = $region25
    $region24: #{tpu_custom_call.1} parent=1 // pred_region
      _
    $region25: #{tpu_custom_call.1} parent=1 // pred_fallthru
      _
    // Predicated region
    $region26: #{tpu_custom_call.1} parent=1 // pred_check
      _
    $region27: #{tpu_custom_call.1} parent=1 // pred_check_branch
      %61 = sbr.rel (0) target = $region29
    $region28: #{tpu_custom_call.1} parent=1 // pred_region
      _
    $region29: #{tpu_custom_call.1} parent=1 // pred_fallthru
      _
    // Predicated region
    $region30: #{tpu_custom_call.1} parent=1 // pred_check
      _
    $region31: #{tpu_custom_call.1} parent=1 // pred_check_branch
      %63 = sbr.rel (0) target = $region33
    $region32: #{tpu_custom_call.1} parent=1 // pred_region
      _
    $region33: #{tpu_custom_call.1} parent=1 // pred_fallthru
      _
    // Predicated region
    $region34: #{tpu_custom_call.1} parent=1 // pred_check
      _
    $region35: #{tpu_custom_call.1} parent=1 // pred_check_branch
      %65 = sbr.rel (0) target = $region37
    $region36: #{tpu_custom_call.1} parent=1 // pred_region
      %67 = dma.done [#allocation3], 4096
    $region37: #{tpu_custom_call.1} parent=1 // pred_fallthru
      _
    // Predicated region
    $region38: #{tpu_custom_call.1} parent=1 // pred_check
      _
    $region39: #{tpu_custom_call.1} parent=1 // pred_check_branch
      %69 = sbr.rel (0) target = $region41
    $region40: #{tpu_custom_call.1} parent=1 // pred_region
      %71 = dma.done [#allocation5], 32768
    $region41: #{tpu_custom_call.1} parent=1 // pred_fallthru
      _
    // Predicated region
    $region42: #{tpu_custom_call.1} parent=1 // pred_check
      _
    $region43: #{tpu_custom_call.1} parent=1 // pred_check_branch
      %73 = sbr.rel (0) target = $region45
    $region44: #{tpu_custom_call.1} parent=1 // pred_region
      %75 = dma.done [#allocation5], 4096
    $region45: #{tpu_custom_call.1} parent=1 // pred_fallthru
      _
    %v77 = vld [vmem:[%s0] sm:$0xff]
    %v78 = vld [vmem:[%s7] sm:$0xff]
    %v79 = vpack.c.bf16 %v77, %v77
    %v80 = vld [vmem:[#allocation2] sm:$0xff]
    %v81 = vld [vmem:[#allocation2 + $0x8] sm:$0xff]
    %v82 = vld [vmem:[#allocation2 + $0x10] sm:$0xff]
    %v83 = vld [vmem:[#allocation2 + $0x18] sm:$0xff]
    %v84 = vld [vmem:[#allocation2 + $0x20] sm:$0xff]
    %v85 = vld [vmem:[#allocation2 + $0x28] sm:$0xff]
    %v86 = vld [vmem:[#allocation2 + $0x30] sm:$0xff]
    %v87 = vld [vmem:[#allocation2 + $0x38] sm:$0xff]
    %v88 = vld [vmem:[#allocation2 + $0x40] sm:$0xff]
    %v89 = vld [vmem:[#allocation2 + $0x48] sm:$0xff]
    %v90 = vld [vmem:[#allocation2 + $0x50] sm:$0xff]
    %v91 = vld [vmem:[#allocation2 + $0x58] sm:$0xff]
    %v92 = vld [vmem:[#allocation2 + $0x60] sm:$0xff]
    %v93 = vld [vmem:[#allocation2 + $0x68] sm:$0xff]
    %v94 = vld [vmem:[#allocation2 + $0x70] sm:$0xff]
    %v95 = vld [vmem:[#allocation2 + $0x78] sm:$0xff]
    %v96 = vld [vmem:[#allocation2 + $0x80] sm:$0xff]
    %v97 = vld [vmem:[#allocation2 + $0x88] sm:$0xff]
    %v98 = vld [vmem:[#allocation2 + $0x90] sm:$0xff]
    %v99 = vld [vmem:[#allocation2 + $0x98] sm:$0xff]
    %v100 = vld [vmem:[#allocation2 + $0xa0] sm:$0xff]
    %v101 = vld [vmem:[#allocation2 + $0xa8] sm:$0xff]
    %v102 = vld [vmem:[#allocation2 + $0xb0] sm:$0xff]
    %v103 = vld [vmem:[#allocation2 + $0xb8] sm:$0xff]
    %v104 = vld [vmem:[#allocation2 + $0xc0] sm:$0xff]
    %v105 = vld [vmem:[#allocation2 + $0xc8] sm:$0xff]
    %v106 = vld [vmem:[#allocation2 + $0xd0] sm:$0xff]
    %v107 = vld [vmem:[#allocation2 + $0xd8] sm:$0xff]
    %v108 = vld [vmem:[#allocation2 + $0xe0] sm:$0xff]
    %v109 = vld [vmem:[#allocation2 + $0xe8] sm:$0xff]
    %v110 = vld [vmem:[#allocation2 + $0xf0] sm:$0xff]
    %v111 = vld [vmem:[#allocation2 + $0xf8] sm:$0xff]
    %v113 = vperm.slane %v78, 0
    %v114 = vperm.slane %v78, 1
    %v115 = vperm.slane %v78, 2
    %v116 = vperm.slane %v78, 3
    %v117 = vperm.slane %v78, 4
    %v118 = vperm.slane %v78, 5
    %v119 = vperm.slane %v78, 6
    %v120 = vperm.slane %v78, 7
    %v161 = vunpack.c.l.b16 %v80
    %v162 = vunpack.c.h.b16 %v80
    %v163 = vunpack.c.l.b16 %v81
    %v164 = vunpack.c.h.b16 %v81
    %v165 = vunpack.c.l.b16 %v82
    %v166 = vunpack.c.h.b16 %v82
    %v167 = vunpack.c.l.b16 %v83
    %v168 = vunpack.c.h.b16 %v83
    %v169 = vunpack.c.l.b16 %v84
    %v170 = vunpack.c.h.b16 %v84
    %v171 = vunpack.c.l.b16 %v85
    %v172 = vunpack.c.h.b16 %v85
    %v173 = vunpack.c.l.b16 %v86
    %v174 = vunpack.c.h.b16 %v86
    %v175 = vunpack.c.l.b16 %v87
    %v176 = vunpack.c.h.b16 %v87
    %v177 = vunpack.c.l.b16 %v88
    %v178 = vunpack.c.h.b16 %v88
    %v179 = vunpack.c.l.b16 %v89
    %v180 = vunpack.c.h.b16 %v89
    %v181 = vunpack.c.l.b16 %v90
    %v182 = vunpack.c.h.b16 %v90
    %v183 = vunpack.c.l.b16 %v91
    %v184 = vunpack.c.h.b16 %v91
    %v185 = vunpack.c.l.b16 %v92
    %v186 = vunpack.c.h.b16 %v92
    %v187 = vunpack.c.l.b16 %v93
    %v188 = vunpack.c.h.b16 %v93
    %v189 = vunpack.c.l.b16 %v94
    %v190 = vunpack.c.h.b16 %v94
    %v191 = vunpack.c.l.b16 %v95
    %v192 = vunpack.c.h.b16 %v95
    %v193 = vunpack.c.l.b16 %v96
    %v194 = vunpack.c.h.b16 %v96
    %v195 = vunpack.c.l.b16 %v97
    %v196 = vunpack.c.h.b16 %v97
    %v197 = vunpack.c.l.b16 %v98
    %v198 = vunpack.c.h.b16 %v98
    %v199 = vunpack.c.l.b16 %v99
    %v200 = vunpack.c.h.b16 %v99
    %v201 = vunpack.c.l.b16 %v100
    %v202 = vunpack.c.h.b16 %v100
    %v203 = vunpack.c.l.b16 %v101
    %v204 = vunpack.c.h.b16 %v101
    %v205 = vunpack.c.l.b16 %v102
    %v206 = vunpack.c.h.b16 %v102
    %v207 = vunpack.c.l.b16 %v103
    %v208 = vunpack.c.h.b16 %v103
    %v209 = vunpack.c.l.b16 %v104
    %v210 = vunpack.c.h.b16 %v104
    %v211 = vunpack.c.l.b16 %v105
    %v212 = vunpack.c.h.b16 %v105
    %v213 = vunpack.c.l.b16 %v106
    %v214 = vunpack.c.h.b16 %v106
    %v215 = vunpack.c.l.b16 %v107
    %v216 = vunpack.c.h.b16 %v107
    %v217 = vunpack.c.l.b16 %v108
    %v218 = vunpack.c.h.b16 %v108
    %v219 = vunpack.c.l.b16 %v109
    %v220 = vunpack.c.h.b16 %v109
    %v221 = vunpack.c.l.b16 %v110
    %v222 = vunpack.c.h.b16 %v110
    %v223 = vunpack.c.l.b16 %v111
    %v224 = vunpack.c.h.b16 %v111
    %v225 = vpack.c.b16 %v169, %v161
    %v226 = vpack.c.b16 %v170, %v162
    %v227 = vpack.c.b16 %v171, %v163
    %v228 = vpack.c.b16 %v172, %v164
    %v229 = vpack.c.b16 %v173, %v165
    %v230 = vpack.c.b16 %v174, %v166
    %v231 = vpack.c.b16 %v175, %v167
    %v232 = vpack.c.b16 %v176, %v168
    %v233 = vpack.c.b16 %v185, %v177
    %v234 = vpack.c.b16 %v186, %v178
    %v235 = vpack.c.b16 %v187, %v179
    %v236 = vpack.c.b16 %v188, %v180
    %v237 = vpack.c.b16 %v189, %v181
    %v238 = vpack.c.b16 %v190, %v182
    %v239 = vpack.c.b16 %v191, %v183
    %v240 = vpack.c.b16 %v192, %v184
    %v241 = vpack.c.b16 %v201, %v193
    %v242 = vpack.c.b16 %v202, %v194
    %v243 = vpack.c.b16 %v203, %v195
    %v244 = vpack.c.b16 %v204, %v196
    %v245 = vpack.c.b16 %v205, %v197
    %v246 = vpack.c.b16 %v206, %v198
    %v247 = vpack.c.b16 %v207, %v199
    %v248 = vpack.c.b16 %v208, %v200
    %v249 = vpack.c.b16 %v217, %v209
    %v250 = vpack.c.b16 %v218, %v210
    %v251 = vpack.c.b16 %v219, %v211
    %v252 = vpack.c.b16 %v220, %v212
    %v253 = vpack.c.b16 %v221, %v213
    %v254 = vpack.c.b16 %v222, %v214
    %v255 = vpack.c.b16 %v223, %v215
    %v256 = vpack.c.b16 %v224, %v216
    %vm289 = vcmask 523264
    %v291 = vsel %vm289, %v79, 0
    %293 = vmatpush.bf16.msra.mxu0 0
    %294 = vmatpush.bf16.msra.mxu0 0
    %295 = vmatpush.bf16.msra.mxu0 0
    %296 = vmatpush.bf16.msra.mxu0 0
    %297 = vmatpush.bf16.msra.mxu0 %v249
    %298 = vmatpush.bf16.msra.mxu0 %v241
    %299 = vmatpush.bf16.msra.mxu0 %v233
    %300 = vmatpush.bf16.msra.mxu0 %v225
    %301 = vmatmul.bf16.gmra.mxu0 %v291
    %v302 = vpop.f32.mrf.mxu0
    %v303 = vadd.f32 %v113, %v302
    %v304 = vpop.f32.mrf.mxu0
    %305 = vdwg.mxu0
    %306 = vmatpush.bf16.msra.mxu0 0
    %307 = vmatpush.bf16.msra.mxu0 0
    %308 = vmatpush.bf16.msra.mxu0 0
    %309 = vmatpush.bf16.msra.mxu0 0
    %310 = vmatpush.bf16.msra.mxu0 %v250
    %311 = vmatpush.bf16.msra.mxu0 %v242
    %312 = vmatpush.bf16.msra.mxu0 %v234
    %313 = vmatpush.bf16.msra.mxu0 %v226
    %314 = vmatmul.bf16.gmra.mxu0 %v291
    %v315 = vpop.f32.mrf.mxu0
    %v316 = vadd.f32 %v114, %v315
    %v317 = vpop.f32.mrf.mxu0
    %318 = vdwg.mxu0
    %319 = vmatpush.bf16.msra.mxu0 0
    %320 = vmatpush.bf16.msra.mxu0 0
    %321 = vmatpush.bf16.msra.mxu0 0
    %322 = vmatpush.bf16.msra.mxu0 0
    %323 = vmatpush.bf16.msra.mxu0 %v251
    %324 = vmatpush.bf16.msra.mxu0 %v243
    %325 = vmatpush.bf16.msra.mxu0 %v235
    %326 = vmatpush.bf16.msra.mxu0 %v227
    %327 = vmatmul.bf16.gmra.mxu0 %v291
    %v328 = vpop.f32.mrf.mxu0
    %v329 = vadd.f32 %v115, %v328
    %v330 = vpop.f32.mrf.mxu0
    %331 = vdwg.mxu0
    %332 = vmatpush.bf16.msra.mxu0 0
    %333 = vmatpush.bf16.msra.mxu0 0
    %334 = vmatpush.bf16.msra.mxu0 0
    %335 = vmatpush.bf16.msra.mxu0 0
    %336 = vmatpush.bf16.msra.mxu0 %v252
    %337 = vmatpush.bf16.msra.mxu0 %v244
    %338 = vmatpush.bf16.msra.mxu0 %v236
    %339 = vmatpush.bf16.msra.mxu0 %v228
    %340 = vmatmul.bf16.gmra.mxu0 %v291
    %v341 = vpop.f32.mrf.mxu0
    %v342 = vadd.f32 %v116, %v341
    %v343 = vpop.f32.mrf.mxu0
    %344 = vdwg.mxu0
    %345 = vmatpush.bf16.msra.mxu0 0
    %346 = vmatpush.bf16.msra.mxu0 0
    %347 = vmatpush.bf16.msra.mxu0 0
    %348 = vmatpush.bf16.msra.mxu0 0
    %349 = vmatpush.bf16.msra.mxu0 %v253
    %350 = vmatpush.bf16.msra.mxu0 %v245
    %351 = vmatpush.bf16.msra.mxu0 %v237
    %352 = vmatpush.bf16.msra.mxu0 %v229
    %353 = vmatmul.bf16.gmra.mxu0 %v291
    %v354 = vpop.f32.mrf.mxu0
    %v355 = vadd.f32 %v117, %v354
    %v356 = vpop.f32.mrf.mxu0
    %357 = vdwg.mxu0
    %358 = vmatpush.bf16.msra.mxu0 0
    %359 = vmatpush.bf16.msra.mxu0 0
    %360 = vmatpush.bf16.msra.mxu0 0
    %361 = vmatpush.bf16.msra.mxu0 0
    %362 = vmatpush.bf16.msra.mxu0 %v254
    %363 = vmatpush.bf16.msra.mxu0 %v246
    %364 = vmatpush.bf16.msra.mxu0 %v238
    %365 = vmatpush.bf16.msra.mxu0 %v230
    %366 = vmatmul.bf16.gmra.mxu0 %v291
    %v367 = vpop.f32.mrf.mxu0
    %v368 = vadd.f32 %v118, %v367
    %v369 = vpop.f32.mrf.mxu0
    %370 = vdwg.mxu0
    %371 = vmatpush.bf16.msra.mxu0 0
    %372 = vmatpush.bf16.msra.mxu0 0
    %373 = vmatpush.bf16.msra.mxu0 0
    %374 = vmatpush.bf16.msra.mxu0 0
    %375 = vmatpush.bf16.msra.mxu0 %v255
    %376 = vmatpush.bf16.msra.mxu0 %v247
    %377 = vmatpush.bf16.msra.mxu0 %v239
    %378 = vmatpush.bf16.msra.mxu0 %v231
    %379 = vmatmul.bf16.gmra.mxu0 %v291
    %v380 = vpop.f32.mrf.mxu0
    %v381 = vadd.f32 %v119, %v380
    %v382 = vpop.f32.mrf.mxu0
    %383 = vdwg.mxu0
    %384 = vmatpush.bf16.msra.mxu0 0
    %385 = vmatpush.bf16.msra.mxu0 0
    %386 = vmatpush.bf16.msra.mxu0 0
    %387 = vmatpush.bf16.msra.mxu0 0
    %388 = vmatpush.bf16.msra.mxu0 %v256
    %389 = vmatpush.bf16.msra.mxu0 %v248
    %390 = vmatpush.bf16.msra.mxu0 %v240
    %391 = vmatpush.bf16.msra.mxu0 %v232
    %392 = vmatmul.bf16.gmra.mxu0 %v291
    %v393 = vpop.f32.mrf.mxu0
    %v394 = vadd.f32 %v120, %v393
    %v395 = vpop.f32.mrf.mxu0
    %396 = vdwg.mxu0
    %vm397 = vcmp.ge.f32.partialorder %v303, 0.0
    %vm398 = vcmp.ge.f32.partialorder %v316, 0.0
    %vm399 = vcmp.ge.f32.partialorder %v329, 0.0
    %vm400 = vcmp.ge.f32.partialorder %v342, 0.0
    %vm401 = vcmp.ge.f32.partialorder %v355, 0.0
    %vm402 = vcmp.ge.f32.partialorder %v368, 0.0
    %vm403 = vcmp.ge.f32.partialorder %v381, 0.0
    %vm404 = vcmp.ge.f32.partialorder %v394, 0.0
    %v405 = vmul.f32 %v303, 0.2
    %v406 = vmul.f32 %v316, 0.2
    %v407 = vmul.f32 %v329, 0.2
    %v408 = vmul.f32 %v342, 0.2
    %v409 = vmul.f32 %v355, 0.2
    %v410 = vmul.f32 %v368, 0.2
    %v411 = vmul.f32 %v381, 0.2
    %v412 = vmul.f32 %v394, 0.2
    %v413 = vsel %vm397, %v303, %v405
    %v414 = vsel %vm398, %v316, %v406
    %v415 = vsel %vm399, %v329, %v407
    %v416 = vsel %vm400, %v342, %v408
    %v417 = vsel %vm401, %v355, %v409
    %v418 = vsel %vm402, %v368, %v410
    %v419 = vsel %vm403, %v381, %v411
    %v420 = vsel %vm404, %v394, %v412
    %v421 = vrot.slane %v413, 4
    %v422 = vadd.f32 %v413, %v421
    %v423 = vrot.slane %v422, 2
    %v424 = vadd.f32 %v422, %v423
    %v425 = vrot.slane %v424, 1
    %v426 = vadd.f32 %v424, %v425
    %v427 = vrot.slane %v414, 4
    %v428 = vadd.f32 %v414, %v427
    %v429 = vrot.slane %v428, 2
    %v430 = vadd.f32 %v428, %v429
    %v431 = vrot.slane %v430, 1
    %v432 = vadd.f32 %v430, %v431
    %v433 = vrot.slane %v415, 4
    %v434 = vadd.f32 %v415, %v433
    %v435 = vrot.slane %v434, 2
    %v436 = vadd.f32 %v434, %v435
    %v437 = vrot.slane %v436, 1
    %v438 = vadd.f32 %v436, %v437
    %v439 = vrot.slane %v416, 4
    %v440 = vadd.f32 %v416, %v439
    %v441 = vrot.slane %v440, 2
    %v442 = vadd.f32 %v440, %v441
    %v443 = vrot.slane %v442, 1
    %v444 = vadd.f32 %v442, %v443
    %v445 = vrot.slane %v417, 4
    %v446 = vadd.f32 %v417, %v445
    %v447 = vrot.slane %v446, 2
    %v448 = vadd.f32 %v446, %v447
    %v449 = vrot.slane %v448, 1
    %v450 = vadd.f32 %v448, %v449
    %v451 = vrot.slane %v418, 4
    %v452 = vadd.f32 %v418, %v451
    %v453 = vrot.slane %v452, 2
    %v454 = vadd.f32 %v452, %v453
    %v455 = vrot.slane %v454, 1
    %v456 = vadd.f32 %v454, %v455
    %v457 = vrot.slane %v419, 4
    %v458 = vadd.f32 %v419, %v457
    %v459 = vrot.slane %v458, 2
    %v460 = vadd.f32 %v458, %v459
    %v461 = vrot.slane %v460, 1
    %v462 = vadd.f32 %v460, %v461
    %v463 = vrot.slane %v420, 4
    %v464 = vadd.f32 %v420, %v463
    %v465 = vrot.slane %v464, 2
    %v466 = vadd.f32 %v464, %v465
    %v467 = vrot.slane %v466, 1
    %v468 = vadd.f32 %v466, %v467
    %v469 = vrcp.pop 8.0
    %v470 = vmul.f32 8.0, %v469
    %v471 = vsub.f32 1.0, %v470
    %v472 = vmul.f32 %v469, %v471
    %v473 = vadd.f32 %v469, %v472
    %vm474 = vweird.f32 %v469
    %v475 = vsel %vm474, %v469, %v473
    %v476 = vmul.f32 %v426, %v475
    %v477 = vmul.f32 %v432, %v475
    %v478 = vmul.f32 %v438, %v475
    %v479 = vmul.f32 %v444, %v475
    %v480 = vmul.f32 %v450, %v475
    %v481 = vmul.f32 %v456, %v475
    %v482 = vmul.f32 %v462, %v475
    %v483 = vmul.f32 %v468, %v475
    %v484 = vsub.f32 %v413, %v476
    %v485 = vsub.f32 %v414, %v477
    %v486 = vsub.f32 %v415, %v478
    %v487 = vsub.f32 %v416, %v479
    %v488 = vsub.f32 %v417, %v480
    %v489 = vsub.f32 %v418, %v481
    %v490 = vsub.f32 %v419, %v482
    %v491 = vsub.f32 %v420, %v483
    %v492 = vmul.f32 %v484, %v484
    %v493 = vmul.f32 %v485, %v485
    %v494 = vmul.f32 %v486, %v486
    %v495 = vmul.f32 %v487, %v487
    %v496 = vmul.f32 %v488, %v488
    %v497 = vmul.f32 %v489, %v489
    %v498 = vmul.f32 %v490, %v490
    %v499 = vmul.f32 %v491, %v491
    %v500 = vrot.slane %v492, 4
    %v501 = vadd.f32 %v492, %v500
    %v502 = vrot.slane %v501, 2
    %v503 = vadd.f32 %v501, %v502
    %v504 = vrot.slane %v503, 1
    %v505 = vadd.f32 %v503, %v504
    %v506 = vrot.slane %v493, 4
    %v507 = vadd.f32 %v493, %v506
    %v508 = vrot.slane %v507, 2
    %v509 = vadd.f32 %v507, %v508
    %v510 = vrot.slane %v509, 1
    %v511 = vadd.f32 %v509, %v510
    %v512 = vrot.slane %v494, 4
    %v513 = vadd.f32 %v494, %v512
    %v514 = vrot.slane %v513, 2
    %v515 = vadd.f32 %v513, %v514
    %v516 = vrot.slane %v515, 1
    %v517 = vadd.f32 %v515, %v516
    %v518 = vrot.slane %v495, 4
    %v519 = vadd.f32 %v495, %v518
    %v520 = vrot.slane %v519, 2
    %v521 = vadd.f32 %v519, %v520
    %v522 = vrot.slane %v521, 1
    %v523 = vadd.f32 %v521, %v522
    %v524 = vrot.slane %v496, 4
    %v525 = vadd.f32 %v496, %v524
    %v526 = vrot.slane %v525, 2
    %v527 = vadd.f32 %v525, %v526
    %v528 = vrot.slane %v527, 1
    %v529 = vadd.f32 %v527, %v528
    %v530 = vrot.slane %v497, 4
    %v531 = vadd.f32 %v497, %v530
    %v532 = vrot.slane %v531, 2
    %v533 = vadd.f32 %v531, %v532
    %v534 = vrot.slane %v533, 1
    %v535 = vadd.f32 %v533, %v534
    %v536 = vrot.slane %v498, 4
    %v537 = vadd.f32 %v498, %v536
    %v538 = vrot.slane %v537, 2
    %v539 = vadd.f32 %v537, %v538
    %v540 = vrot.slane %v539, 1
    %v541 = vadd.f32 %v539, %v540
    %v542 = vrot.slane %v499, 4
    %v543 = vadd.f32 %v499, %v542
    %v544 = vrot.slane %v543, 2
    %v545 = vadd.f32 %v543, %v544
    %v546 = vrot.slane %v545, 1
    %v547 = vadd.f32 %v545, %v546
    %v548 = vmul.f32 %v505, %v475
    %v549 = vmul.f32 %v511, %v475
    %v550 = vmul.f32 %v517, %v475
    %v551 = vmul.f32 %v523, %v475
    %v552 = vmul.f32 %v529, %v475
    %v553 = vmul.f32 %v535, %v475
    %v554 = vmul.f32 %v541, %v475
    %v555 = vmul.f32 %v547, %v475
    %v556 = vadd.f32 %v548, 1e-05
    %v557 = vadd.f32 %v549, 1e-05
    %v558 = vadd.f32 %v550, 1e-05
    %v559 = vadd.f32 %v551, 1e-05
    %v560 = vadd.f32 %v552, 1e-05
    %v561 = vadd.f32 %v553, 1e-05
    %v562 = vadd.f32 %v554, 1e-05
    %v563 = vadd.f32 %v555, 1e-05
    %v564 = vrsqrt.pop %v556
    %v565 = vmul.f32 %v564, %v556
    %v566 = vmul.f32 %v565, %v564
    %v567 = vmul.f32 0.5, %v566
    %v568 = vsub.f32 1.5, %v567
    %v569 = vmul.f32 %v564, %v568
    %vm570 = vweird.f32 %v556
    %vm571 = vweird.f32 %v564
    %vm572 = vmor %vm570, %vm571
    %v573 = vsel %vm572, %v564, %v569
    %v574 = vrsqrt.pop %v557
    %v575 = vmul.f32 %v574, %v557
    %v576 = vmul.f32 %v575, %v574
    %v577 = vmul.f32 0.5, %v576
    %v578 = vsub.f32 1.5, %v577
    %v579 = vmul.f32 %v574, %v578
    %vm580 = vweird.f32 %v557
    %vm581 = vweird.f32 %v574
    %vm582 = vmor %vm580, %vm581
    %v583 = vsel %vm582, %v574, %v579
    %v584 = vrsqrt.pop %v558
    %v585 = vmul.f32 %v584, %v558
    %v586 = vmul.f32 %v585, %v584
    %v587 = vmul.f32 0.5, %v586
    %v588 = vsub.f32 1.5, %v587
    %v589 = vmul.f32 %v584, %v588
    %vm590 = vweird.f32 %v558
    %vm591 = vweird.f32 %v584
    %vm592 = vmor %vm590, %vm591
    %v593 = vsel %vm592, %v584, %v589
    %v594 = vrsqrt.pop %v559
    %v595 = vmul.f32 %v594, %v559
    %v596 = vmul.f32 %v595, %v594
    %v597 = vmul.f32 0.5, %v596
    %v598 = vsub.f32 1.5, %v597
    %v599 = vmul.f32 %v594, %v598
    %vm600 = vweird.f32 %v559
    %vm601 = vweird.f32 %v594
    %vm602 = vmor %vm600, %vm601
    %v603 = vsel %vm602, %v594, %v599
    %v604 = vrsqrt.pop %v560
    %v605 = vmul.f32 %v604, %v560
    %v606 = vmul.f32 %v605, %v604
    %v607 = vmul.f32 0.5, %v606
    %v608 = vsub.f32 1.5, %v607
    %v609 = vmul.f32 %v604, %v608
    %vm610 = vweird.f32 %v560
    %vm611 = vweird.f32 %v604
    %vm612 = vmor %vm610, %vm611
    %v613 = vsel %vm612, %v604, %v609
    %v614 = vrsqrt.pop %v561
    %v615 = vmul.f32 %v614, %v561
    %v616 = vmul.f32 %v615, %v614
    %v617 = vmul.f32 0.5, %v616
    %v618 = vsub.f32 1.5, %v617
    %v619 = vmul.f32 %v614, %v618
    %vm620 = vweird.f32 %v561
    %vm621 = vweird.f32 %v614
    %vm622 = vmor %vm620, %vm621
    %v623 = vsel %vm622, %v614, %v619
    %v624 = vrsqrt.pop %v562
    %v625 = vmul.f32 %v624, %v562
    %v626 = vmul.f32 %v625, %v624
    %v627 = vmul.f32 0.5, %v626
    %v628 = vsub.f32 1.5, %v627
    %v629 = vmul.f32 %v624, %v628
    %vm630 = vweird.f32 %v562
    %vm631 = vweird.f32 %v624
    %vm632 = vmor %vm630, %vm631
    %v633 = vsel %vm632, %v624, %v629
    %v634 = vrsqrt.pop %v563
    %v635 = vmul.f32 %v634, %v563
    %v636 = vmul.f32 %v635, %v634
    %v637 = vmul.f32 0.5, %v636
    %v638 = vsub.f32 1.5, %v637
    %v639 = vmul.f32 %v634, %v638
    %vm640 = vweird.f32 %v563
    %vm641 = vweird.f32 %v634
    %vm642 = vmor %vm640, %vm641
    %v643 = vsel %vm642, %v634, %v639
    %v644 = vmul.f32 %v484, %v573
    %v645 = vmul.f32 %v485, %v583
    %v646 = vmul.f32 %v486, %v593
    %v647 = vmul.f32 %v487, %v603
    %v648 = vmul.f32 %v488, %v613
    %v649 = vmul.f32 %v489, %v623
    %v650 = vmul.f32 %v490, %v633
    %v651 = vmul.f32 %v491, %v643
    %v652 = vld [vmem:[%s7 + $0x8] sm:$0xf]
    %v653 = vpack.c.bf16 %v644, %v644
    %v654 = vpack.c.bf16 %v645, %v645
    %v655 = vpack.c.bf16 %v646, %v646
    %v656 = vpack.c.bf16 %v647, %v647
    %v657 = vpack.c.bf16 %v648, %v648
    %v658 = vpack.c.bf16 %v649, %v649
    %v659 = vpack.c.bf16 %v650, %v650
    %v660 = vpack.c.bf16 %v651, %v651
    %v661 = vld [vmem:[#allocation4] sm:$0xff]
    %v662 = vld [vmem:[#allocation4 + $0x8] sm:$0xff]
    %v663 = vld [vmem:[#allocation4 + $0x10] sm:$0xff]
    %v664 = vld [vmem:[#allocation4 + $0x18] sm:$0xff]
    %v665 = vld [vmem:[#allocation4 + $0x20] sm:$0xff]
    %v666 = vld [vmem:[#allocation4 + $0x28] sm:$0xff]
    %v667 = vld [vmem:[#allocation4 + $0x30] sm:$0xff]
    %v668 = vld [vmem:[#allocation4 + $0x38] sm:$0xff]
    %v669 = vld [vmem:[#allocation4 + $0x40] sm:$0xff]
    %v670 = vld [vmem:[#allocation4 + $0x48] sm:$0xff]
    %v671 = vld [vmem:[#allocation4 + $0x50] sm:$0xff]
    %v672 = vld [vmem:[#allocation4 + $0x58] sm:$0xff]
    %v673 = vld [vmem:[#allocation4 + $0x60] sm:$0xff]
    %v674 = vld [vmem:[#allocation4 + $0x68] sm:$0xff]
    %v675 = vld [vmem:[#allocation4 + $0x70] sm:$0xff]
    %v676 = vld [vmem:[#allocation4 + $0x78] sm:$0xff]
    %v677 = vld [vmem:[#allocation4 + $0x80] sm:$0xff]
    %v678 = vld [vmem:[#allocation4 + $0x88] sm:$0xff]
    %v679 = vld [vmem:[#allocation4 + $0x90] sm:$0xff]
    %v680 = vld [vmem:[#allocation4 + $0x98] sm:$0xff]
    %v681 = vld [vmem:[#allocation4 + $0xa0] sm:$0xff]
    %v682 = vld [vmem:[#allocation4 + $0xa8] sm:$0xff]
    %v683 = vld [vmem:[#allocation4 + $0xb0] sm:$0xff]
    %v684 = vld [vmem:[#allocation4 + $0xb8] sm:$0xff]
    %v685 = vld [vmem:[#allocation4 + $0xc0] sm:$0xff]
    %v686 = vld [vmem:[#allocation4 + $0xc8] sm:$0xff]
    %v687 = vld [vmem:[#allocation4 + $0xd0] sm:$0xff]
    %v688 = vld [vmem:[#allocation4 + $0xd8] sm:$0xff]
    %v689 = vld [vmem:[#allocation4 + $0xe0] sm:$0xff]
    %v690 = vld [vmem:[#allocation4 + $0xe8] sm:$0xff]
    %v691 = vld [vmem:[#allocation4 + $0xf0] sm:$0xff]
    %v692 = vld [vmem:[#allocation4 + $0xf8] sm:$0xff]
    %v693 = vld [vmem:[#allocation4 + $0x100] sm:$0xff]
    %v694 = vld [vmem:[#allocation4 + $0x108] sm:$0xff]
    %v695 = vld [vmem:[#allocation4 + $0x110] sm:$0xff]
    %v696 = vld [vmem:[#allocation4 + $0x118] sm:$0xff]
    %v697 = vld [vmem:[#allocation4 + $0x120] sm:$0xff]
    %v698 = vld [vmem:[#allocation4 + $0x128] sm:$0xff]
    %v699 = vld [vmem:[#allocation4 + $0x130] sm:$0xff]
    %v700 = vld [vmem:[#allocation4 + $0x138] sm:$0xff]
    %v701 = vld [vmem:[#allocation4 + $0x140] sm:$0xff]
    %v702 = vld [vmem:[#allocation4 + $0x148] sm:$0xff]
    %v703 = vld [vmem:[#allocation4 + $0x150] sm:$0xff]
    %v704 = vld [vmem:[#allocation4 + $0x158] sm:$0xff]
    %v705 = vld [vmem:[#allocation4 + $0x160] sm:$0xff]
    %v706 = vld [vmem:[#allocation4 + $0x168] sm:$0xff]
    %v707 = vld [vmem:[#allocation4 + $0x170] sm:$0xff]
    %v708 = vld [vmem:[#allocation4 + $0x178] sm:$0xff]
    %v709 = vld [vmem:[#allocation4 + $0x180] sm:$0xff]
    %v710 = vld [vmem:[#allocation4 + $0x188] sm:$0xff]
    %v711 = vld [vmem:[#allocation4 + $0x190] sm:$0xff]
    %v712 = vld [vmem:[#allocation4 + $0x198] sm:$0xff]
    %v713 = vld [vmem:[#allocation4 + $0x1a0] sm:$0xff]
    %v714 = vld [vmem:[#allocation4 + $0x1a8] sm:$0xff]
    %v715 = vld [vmem:[#allocation4 + $0x1b0] sm:$0xff]
    %v716 = vld [vmem:[#allocation4 + $0x1b8] sm:$0xff]
    %v717 = vld [vmem:[#allocation4 + $0x1c0] sm:$0xff]
    %v718 = vld [vmem:[#allocation4 + $0x1c8] sm:$0xff]
    %v719 = vld [vmem:[#allocation4 + $0x1d0] sm:$0xff]
    %v720 = vld [vmem:[#allocation4 + $0x1d8] sm:$0xff]
    %v721 = vld [vmem:[#allocation4 + $0x1e0] sm:$0xff]
    %v722 = vld [vmem:[#allocation4 + $0x1e8] sm:$0xff]
    %v723 = vld [vmem:[#allocation4 + $0x1f0] sm:$0xff]
    %v724 = vld [vmem:[#allocation4 + $0x1f8] sm:$0xff]
    %v725 = vld [vmem:[#allocation4 + $0x200] sm:$0xff]
    %v726 = vld [vmem:[#allocation4 + $0x208] sm:$0xff]
    %v727 = vld [vmem:[#allocation4 + $0x210] sm:$0xff]
    %v728 = vld [vmem:[#allocation4 + $0x218] sm:$0xff]
    %v729 = vld [vmem:[#allocation4 + $0x220] sm:$0xff]
    %v730 = vld [vmem:[#allocation4 + $0x228] sm:$0xff]
    %v731 = vld [vmem:[#allocation4 + $0x230] sm:$0xff]
    %v732 = vld [vmem:[#allocation4 + $0x238] sm:$0xff]
    %v733 = vld [vmem:[#allocation4 + $0x240] sm:$0xff]
    %v734 = vld [vmem:[#allocation4 + $0x248] sm:$0xff]
    %v735 = vld [vmem:[#allocation4 + $0x250] sm:$0xff]
    %v736 = vld [vmem:[#allocation4 + $0x258] sm:$0xff]
    %v737 = vld [vmem:[#allocation4 + $0x260] sm:$0xff]
    %v738 = vld [vmem:[#allocation4 + $0x268] sm:$0xff]
    %v739 = vld [vmem:[#allocation4 + $0x270] sm:$0xff]
    %v740 = vld [vmem:[#allocation4 + $0x278] sm:$0xff]
    %v741 = vld [vmem:[#allocation4 + $0x280] sm:$0xff]
    %v742 = vld [vmem:[#allocation4 + $0x288] sm:$0xff]
    %v743 = vld [vmem:[#allocation4 + $0x290] sm:$0xff]
    %v744 = vld [vmem:[#allocation4 + $0x298] sm:$0xff]
    %v745 = vld [vmem:[#allocation4 + $0x2a0] sm:$0xff]
    %v746 = vld [vmem:[#allocation4 + $0x2a8] sm:$0xff]
    %v747 = vld [vmem:[#allocation4 + $0x2b0] sm:$0xff]
    %v748 = vld [vmem:[#allocation4 + $0x2b8] sm:$0xff]
    %v749 = vld [vmem:[#allocation4 + $0x2c0] sm:$0xff]
    %v750 = vld [vmem:[#allocation4 + $0x2c8] sm:$0xff]
    %v751 = vld [vmem:[#allocation4 + $0x2d0] sm:$0xff]
    %v752 = vld [vmem:[#allocation4 + $0x2d8] sm:$0xff]
    %v753 = vld [vmem:[#allocation4 + $0x2e0] sm:$0xff]
    %v754 = vld [vmem:[#allocation4 + $0x2e8] sm:$0xff]
    %v755 = vld [vmem:[#allocation4 + $0x2f0] sm:$0xff]
    %v756 = vld [vmem:[#allocation4 + $0x2f8] sm:$0xff]
    %v757 = vld [vmem:[#allocation4 + $0x300] sm:$0xff]
    %v758 = vld [vmem:[#allocation4 + $0x308] sm:$0xff]
    %v759 = vld [vmem:[#allocation4 + $0x310] sm:$0xff]
    %v760 = vld [vmem:[#allocation4 + $0x318] sm:$0xff]
    %v761 = vld [vmem:[#allocation4 + $0x320] sm:$0xff]
    %v762 = vld [vmem:[#allocation4 + $0x328] sm:$0xff]
    %v763 = vld [vmem:[#allocation4 + $0x330] sm:$0xff]
    %v764 = vld [vmem:[#allocation4 + $0x338] sm:$0xff]
    %v765 = vld [vmem:[#allocation4 + $0x340] sm:$0xff]
    %v766 = vld [vmem:[#allocation4 + $0x348] sm:$0xff]
    %v767 = vld [vmem:[#allocation4 + $0x350] sm:$0xff]
    %v768 = vld [vmem:[#allocation4 + $0x358] sm:$0xff]
    %v769 = vld [vmem:[#allocation4 + $0x360] sm:$0xff]
    %v770 = vld [vmem:[#allocation4 + $0x368] sm:$0xff]
    %v771 = vld [vmem:[#allocation4 + $0x370] sm:$0xff]
    %v772 = vld [vmem:[#allocation4 + $0x378] sm:$0xff]
    %v773 = vld [vmem:[#allocation4 + $0x380] sm:$0xff]
    %v774 = vld [vmem:[#allocation4 + $0x388] sm:$0xff]
    %v775 = vld [vmem:[#allocation4 + $0x390] sm:$0xff]
    %v776 = vld [vmem:[#allocation4 + $0x398] sm:$0xff]
    %v777 = vld [vmem:[#allocation4 + $0x3a0] sm:$0xff]
    %v778 = vld [vmem:[#allocation4 + $0x3a8] sm:$0xff]
    %v779 = vld [vmem:[#allocation4 + $0x3b0] sm:$0xff]
    %v780 = vld [vmem:[#allocation4 + $0x3b8] sm:$0xff]
    %v781 = vld [vmem:[#allocation4 + $0x3c0] sm:$0xff]
    %v782 = vld [vmem:[#allocation4 + $0x3c8] sm:$0xff]
    %v783 = vld [vmem:[#allocation4 + $0x3d0] sm:$0xff]
    %v784 = vld [vmem:[#allocation4 + $0x3d8] sm:$0xff]
    %v785 = vld [vmem:[#allocation4 + $0x3e0] sm:$0xff]
    %v786 = vld [vmem:[#allocation4 + $0x3e8] sm:$0xff]
    %v787 = vld [vmem:[#allocation4 + $0x3f0] sm:$0xff]
    %v788 = vld [vmem:[#allocation4 + $0x3f8] sm:$0xff]
    %v789 = vld [vmem:[#allocation4 + $0x400] sm:$0xff]
    %v790 = vld [vmem:[#allocation4 + $0x408] sm:$0xff]
    %v791 = vld [vmem:[#allocation4 + $0x410] sm:$0xff]
    %v792 = vld [vmem:[#allocation4 + $0x418] sm:$0xff]
    %v793 = vld [vmem:[#allocation4 + $0x420] sm:$0xff]
    %v794 = vld [vmem:[#allocation4 + $0x428] sm:$0xff]
    %v795 = vld [vmem:[#allocation4 + $0x430] sm:$0xff]
    %v796 = vld [vmem:[#allocation4 + $0x438] sm:$0xff]
    %v797 = vld [vmem:[#allocation4 + $0x440] sm:$0xff]
    %v798 = vld [vmem:[#allocation4 + $0x448] sm:$0xff]
    %v799 = vld [vmem:[#allocation4 + $0x450] sm:$0xff]
    %v800 = vld [vmem:[#allocation4 + $0x458] sm:$0xff]
    %v801 = vld [vmem:[#allocation4 + $0x460] sm:$0xff]
    %v802 = vld [vmem:[#allocation4 + $0x468] sm:$0xff]
    %v803 = vld [vmem:[#allocation4 + $0x470] sm:$0xff]
    %v804 = vld [vmem:[#allocation4 + $0x478] sm:$0xff]
    %v805 = vld [vmem:[#allocation4 + $0x480] sm:$0xff]
    %v806 = vld [vmem:[#allocation4 + $0x488] sm:$0xff]
    %v807 = vld [vmem:[#allocation4 + $0x490] sm:$0xff]
    %v808 = vld [vmem:[#allocation4 + $0x498] sm:$0xff]
    %v809 = vld [vmem:[#allocation4 + $0x4a0] sm:$0xff]
    %v810 = vld [vmem:[#allocation4 + $0x4a8] sm:$0xff]
    %v811 = vld [vmem:[#allocation4 + $0x4b0] sm:$0xff]
    %v812 = vld [vmem:[#allocation4 + $0x4b8] sm:$0xff]
    %v813 = vld [vmem:[#allocation4 + $0x4c0] sm:$0xff]
    %v814 = vld [vmem:[#allocation4 + $0x4c8] sm:$0xff]
    %v815 = vld [vmem:[#allocation4 + $0x4d0] sm:$0xff]
    %v816 = vld [vmem:[#allocation4 + $0x4d8] sm:$0xff]
    %v817 = vld [vmem:[#allocation4 + $0x4e0] sm:$0xff]
    %v818 = vld [vmem:[#allocation4 + $0x4e8] sm:$0xff]
    %v819 = vld [vmem:[#allocation4 + $0x4f0] sm:$0xff]
    %v820 = vld [vmem:[#allocation4 + $0x4f8] sm:$0xff]
    %v821 = vld [vmem:[#allocation4 + $0x500] sm:$0xff]
    %v822 = vld [vmem:[#allocation4 + $0x508] sm:$0xff]
    %v823 = vld [vmem:[#allocation4 + $0x510] sm:$0xff]
    %v824 = vld [vmem:[#allocation4 + $0x518] sm:$0xff]
    %v825 = vld [vmem:[#allocation4 + $0x520] sm:$0xff]
    %v826 = vld [vmem:[#allocation4 + $0x528] sm:$0xff]
    %v827 = vld [vmem:[#allocation4 + $0x530] sm:$0xff]
    %v828 = vld [vmem:[#allocation4 + $0x538] sm:$0xff]
    %v829 = vld [vmem:[#allocation4 + $0x540] sm:$0xff]
    %v830 = vld [vmem:[#allocation4 + $0x548] sm:$0xff]
    %v831 = vld [vmem:[#allocation4 + $0x550] sm:$0xff]
    %v832 = vld [vmem:[#allocation4 + $0x558] sm:$0xff]
    %v833 = vld [vmem:[#allocation4 + $0x560] sm:$0xff]
    %v834 = vld [vmem:[#allocation4 + $0x568] sm:$0xff]
    %v835 = vld [vmem:[#allocation4 + $0x570] sm:$0xff]
    %v836 = vld [vmem:[#allocation4 + $0x578] sm:$0xff]
    %v837 = vld [vmem:[#allocation4 + $0x580] sm:$0xff]
    %v838 = vld [vmem:[#allocation4 + $0x588] sm:$0xff]
    %v839 = vld [vmem:[#allocation4 + $0x590] sm:$0xff]
    %v840 = vld [vmem:[#allocation4 + $0x598] sm:$0xff]
    %v841 = vld [vmem:[#allocation4 + $0x5a0] sm:$0xff]
    %v842 = vld [vmem:[#allocation4 + $0x5a8] sm:$0xff]
    %v843 = vld [vmem:[#allocation4 + $0x5b0] sm:$0xff]
    %v844 = vld [vmem:[#allocation4 + $0x5b8] sm:$0xff]
    %v845 = vld [vmem:[#allocation4 + $0x5c0] sm:$0xff]
    %v846 = vld [vmem:[#allocation4 + $0x5c8] sm:$0xff]
    %v847 = vld [vmem:[#allocation4 + $0x5d0] sm:$0xff]
    %v848 = vld [vmem:[#allocation4 + $0x5d8] sm:$0xff]
    %v849 = vld [vmem:[#allocation4 + $0x5e0] sm:$0xff]
    %v850 = vld [vmem:[#allocation4 + $0x5e8] sm:$0xff]
    %v851 = vld [vmem:[#allocation4 + $0x5f0] sm:$0xff]
    %v852 = vld [vmem:[#allocation4 + $0x5f8] sm:$0xff]
    %v853 = vld [vmem:[#allocation4 + $0x600] sm:$0xff]
    %v854 = vld [vmem:[#allocation4 + $0x608] sm:$0xff]
    %v855 = vld [vmem:[#allocation4 + $0x610] sm:$0xff]
    %v856 = vld [vmem:[#allocation4 + $0x618] sm:$0xff]
    %v857 = vld [vmem:[#allocation4 + $0x620] sm:$0xff]
    %v858 = vld [vmem:[#allocation4 + $0x628] sm:$0xff]
    %v859 = vld [vmem:[#allocation4 + $0x630] sm:$0xff]
    %v860 = vld [vmem:[#allocation4 + $0x638] sm:$0xff]
    %v861 = vld [vmem:[#allocation4 + $0x640] sm:$0xff]
    %v862 = vld [vmem:[#allocation4 + $0x648] sm:$0xff]
    %v863 = vld [vmem:[#allocation4 + $0x650] sm:$0xff]
    %v864 = vld [vmem:[#allocation4 + $0x658] sm:$0xff]
    %v865 = vld [vmem:[#allocation4 + $0x660] sm:$0xff]
    %v866 = vld [vmem:[#allocation4 + $0x668] sm:$0xff]
    %v867 = vld [vmem:[#allocation4 + $0x670] sm:$0xff]
    %v868 = vld [vmem:[#allocation4 + $0x678] sm:$0xff]
    %v869 = vld [vmem:[#allocation4 + $0x680] sm:$0xff]
    %v870 = vld [vmem:[#allocation4 + $0x688] sm:$0xff]
    %v871 = vld [vmem:[#allocation4 + $0x690] sm:$0xff]
    %v872 = vld [vmem:[#allocation4 + $0x698] sm:$0xff]
    %v873 = vld [vmem:[#allocation4 + $0x6a0] sm:$0xff]
    %v874 = vld [vmem:[#allocation4 + $0x6a8] sm:$0xff]
    %v875 = vld [vmem:[#allocation4 + $0x6b0] sm:$0xff]
    %v876 = vld [vmem:[#allocation4 + $0x6b8] sm:$0xff]
    %v877 = vld [vmem:[#allocation4 + $0x6c0] sm:$0xff]
    %v878 = vld [vmem:[#allocation4 + $0x6c8] sm:$0xff]
    %v879 = vld [vmem:[#allocation4 + $0x6d0] sm:$0xff]
    %v880 = vld [vmem:[#allocation4 + $0x6d8] sm:$0xff]
    %v881 = vld [vmem:[#allocation4 + $0x6e0] sm:$0xff]
    %v882 = vld [vmem:[#allocation4 + $0x6e8] sm:$0xff]
    %v883 = vld [vmem:[#allocation4 + $0x6f0] sm:$0xff]
    %v884 = vld [vmem:[#allocation4 + $0x6f8] sm:$0xff]
    %v885 = vld [vmem:[#allocation4 + $0x700] sm:$0xff]
    %v886 = vld [vmem:[#allocation4 + $0x708] sm:$0xff]
    %v887 = vld [vmem:[#allocation4 + $0x710] sm:$0xff]
    %v888 = vld [vmem:[#allocation4 + $0x718] sm:$0xff]
    %v889 = vld [vmem:[#allocation4 + $0x720] sm:$0xff]
    %v890 = vld [vmem:[#allocation4 + $0x728] sm:$0xff]
    %v891 = vld [vmem:[#allocation4 + $0x730] sm:$0xff]
    %v892 = vld [vmem:[#allocation4 + $0x738] sm:$0xff]
    %v893 = vld [vmem:[#allocation4 + $0x740] sm:$0xff]
    %v894 = vld [vmem:[#allocation4 + $0x748] sm:$0xff]
    %v895 = vld [vmem:[#allocation4 + $0x750] sm:$0xff]
    %v896 = vld [vmem:[#allocation4 + $0x758] sm:$0xff]
    %v897 = vld [vmem:[#allocation4 + $0x760] sm:$0xff]
    %v898 = vld [vmem:[#allocation4 + $0x768] sm:$0xff]
    %v899 = vld [vmem:[#allocation4 + $0x770] sm:$0xff]
    %v900 = vld [vmem:[#allocation4 + $0x778] sm:$0xff]
    %v901 = vld [vmem:[#allocation4 + $0x780] sm:$0xff]
    %v902 = vld [vmem:[#allocation4 + $0x788] sm:$0xff]
    %v903 = vld [vmem:[#allocation4 + $0x790] sm:$0xff]
    %v904 = vld [vmem:[#allocation4 + $0x798] sm:$0xff]
    %v905 = vld [vmem:[#allocation4 + $0x7a0] sm:$0xff]
    %v906 = vld [vmem:[#allocation4 + $0x7a8] sm:$0xff]
    %v907 = vld [vmem:[#allocation4 + $0x7b0] sm:$0xff]
    %v908 = vld [vmem:[#allocation4 + $0x7b8] sm:$0xff]
    %v909 = vld [vmem:[#allocation4 + $0x7c0] sm:$0xff]
    %v910 = vld [vmem:[#allocation4 + $0x7c8] sm:$0xff]
    %v911 = vld [vmem:[#allocation4 + $0x7d0] sm:$0xff]
    %v912 = vld [vmem:[#allocation4 + $0x7d8] sm:$0xff]
    %v913 = vld [vmem:[#allocation4 + $0x7e0] sm:$0xff]
    %v914 = vld [vmem:[#allocation4 + $0x7e8] sm:$0xff]
    %v915 = vld [vmem:[#allocation4 + $0x7f0] sm:$0xff]
    %v916 = vld [vmem:[#allocation4 + $0x7f8] sm:$0xff]
    %v918 = vperm.slane %v652, 0
    %v919 = vperm.slane %v652, 1
    %v920 = vperm.slane %v652, 2
    %v921 = vperm.slane %v652, 3
    %v1182 = vunpack.c.l.b16 %v661
    %v1183 = vunpack.c.h.b16 %v661
    %v1184 = vunpack.c.l.b16 %v662
    %v1185 = vunpack.c.h.b16 %v662
    %v1186 = vunpack.c.l.b16 %v663
    %v1187 = vunpack.c.h.b16 %v663
    %v1188 = vunpack.c.l.b16 %v664
    %v1189 = vunpack.c.h.b16 %v664
    %v1190 = vunpack.c.l.b16 %v665
    %v1191 = vunpack.c.h.b16 %v665
    %v1192 = vunpack.c.l.b16 %v666
    %v1193 = vunpack.c.h.b16 %v666
    %v1194 = vunpack.c.l.b16 %v667
    %v1195 = vunpack.c.h.b16 %v667
    %v1196 = vunpack.c.l.b16 %v668
    %v1197 = vunpack.c.h.b16 %v668
    %v1198 = vunpack.c.l.b16 %v669
    %v1199 = vunpack.c.h.b16 %v669
    %v1200 = vunpack.c.l.b16 %v670
    %v1201 = vunpack.c.h.b16 %v670
    %v1202 = vunpack.c.l.b16 %v671
    %v1203 = vunpack.c.h.b16 %v671
    %v1204 = vunpack.c.l.b16 %v672
    %v1205 = vunpack.c.h.b16 %v672
    %v1206 = vunpack.c.l.b16 %v673
    %v1207 = vunpack.c.h.b16 %v673
    %v1208 = vunpack.c.l.b16 %v674
    %v1209 = vunpack.c.h.b16 %v674
    %v1210 = vunpack.c.l.b16 %v675
    %v1211 = vunpack.c.h.b16 %v675
    %v1212 = vunpack.c.l.b16 %v676
    %v1213 = vunpack.c.h.b16 %v676
    %v1214 = vunpack.c.l.b16 %v677
    %v1215 = vunpack.c.h.b16 %v677
    %v1216 = vunpack.c.l.b16 %v678
    %v1217 = vunpack.c.h.b16 %v678
    %v1218 = vunpack.c.l.b16 %v679
    %v1219 = vunpack.c.h.b16 %v679
    %v1220 = vunpack.c.l.b16 %v680
    %v1221 = vunpack.c.h.b16 %v680
    %v1222 = vunpack.c.l.b16 %v681
    %v1223 = vunpack.c.h.b16 %v681
    %v1224 = vunpack.c.l.b16 %v682
    %v1225 = vunpack.c.h.b16 %v682
    %v1226 = vunpack.c.l.b16 %v683
    %v1227 = vunpack.c.h.b16 %v683
    %v1228 = vunpack.c.l.b16 %v684
    %v1229 = vunpack.c.h.b16 %v684
    %v1230 = vunpack.c.l.b16 %v685
    %v1231 = vunpack.c.h.b16 %v685
    %v1232 = vunpack.c.l.b16 %v686
    %v1233 = vunpack.c.h.b16 %v686
    %v1234 = vunpack.c.l.b16 %v687
    %v1235 = vunpack.c.h.b16 %v687
    %v1236 = vunpack.c.l.b16 %v688
    %v1237 = vunpack.c.h.b16 %v688
    %v1238 = vunpack.c.l.b16 %v689
    %v1239 = vunpack.c.h.b16 %v689
    %v1240 = vunpack.c.l.b16 %v690
    %v1241 = vunpack.c.h.b16 %v690
    %v1242 = vunpack.c.l.b16 %v691
    %v1243 = vunpack.c.h.b16 %v691
    %v1244 = vunpack.c.l.b16 %v692
    %v1245 = vunpack.c.h.b16 %v692
    %v1246 = vunpack.c.l.b16 %v693
    %v1247 = vunpack.c.h.b16 %v693
    %v1248 = vunpack.c.l.b16 %v694
    %v1249 = vunpack.c.h.b16 %v694
    %v1250 = vunpack.c.l.b16 %v695
    %v1251 = vunpack.c.h.b16 %v695
    %v1252 = vunpack.c.l.b16 %v696
    %v1253 = vunpack.c.h.b16 %v696
    %v1254 = vunpack.c.l.b16 %v697
    %v1255 = vunpack.c.h.b16 %v697
    %v1256 = vunpack.c.l.b16 %v698
    %v1257 = vunpack.c.h.b16 %v698
    %v1258 = vunpack.c.l.b16 %v699
    %v1259 = vunpack.c.h.b16 %v699
    %v1260 = vunpack.c.l.b16 %v700
    %v1261 = vunpack.c.h.b16 %v700
    %v1262 = vunpack.c.l.b16 %v701
    %v1263 = vunpack.c.h.b16 %v701
    %v1264 = vunpack.c.l.b16 %v702
    %v1265 = vunpack.c.h.b16 %v702
    %v1266 = vunpack.c.l.b16 %v703
    %v1267 = vunpack.c.h.b16 %v703
    %v1268 = vunpack.c.l.b16 %v704
    %v1269 = vunpack.c.h.b16 %v704
    %v1270 = vunpack.c.l.b16 %v705
    %v1271 = vunpack.c.h.b16 %v705
    %v1272 = vunpack.c.l.b16 %v706
    %v1273 = vunpack.c.h.b16 %v706
    %v1274 = vunpack.c.l.b16 %v707
    %v1275 = vunpack.c.h.b16 %v707
    %v1276 = vunpack.c.l.b16 %v708
    %v1277 = vunpack.c.h.b16 %v708
    %v1278 = vunpack.c.l.b16 %v709
    %v1279 = vunpack.c.h.b16 %v709
    %v1280 = vunpack.c.l.b16 %v710
    %v1281 = vunpack.c.h.b16 %v710
    %v1282 = vunpack.c.l.b16 %v711
    %v1283 = vunpack.c.h.b16 %v711
    %v1284 = vunpack.c.l.b16 %v712
    %v1285 = vunpack.c.h.b16 %v712
    %v1286 = vunpack.c.l.b16 %v713
    %v1287 = vunpack.c.h.b16 %v713
    %v1288 = vunpack.c.l.b16 %v714
    %v1289 = vunpack.c.h.b16 %v714
    %v1290 = vunpack.c.l.b16 %v715
    %v1291 = vunpack.c.h.b16 %v715
    %v1292 = vunpack.c.l.b16 %v716
    %v1293 = vunpack.c.h.b16 %v716
    %v1294 = vunpack.c.l.b16 %v717
    %v1295 = vunpack.c.h.b16 %v717
    %v1296 = vunpack.c.l.b16 %v718
    %v1297 = vunpack.c.h.b16 %v718
    %v1298 = vunpack.c.l.b16 %v719
    %v1299 = vunpack.c.h.b16 %v719
    %v1300 = vunpack.c.l.b16 %v720
    %v1301 = vunpack.c.h.b16 %v720
    %v1302 = vunpack.c.l.b16 %v721
    %v1303 = vunpack.c.h.b16 %v721
    %v1304 = vunpack.c.l.b16 %v722
    %v1305 = vunpack.c.h.b16 %v722
    %v1306 = vunpack.c.l.b16 %v723
    %v1307 = vunpack.c.h.b16 %v723
    %v1308 = vunpack.c.l.b16 %v724
    %v1309 = vunpack.c.h.b16 %v724
    %v1310 = vunpack.c.l.b16 %v725
    %v1311 = vunpack.c.h.b16 %v725
    %v1312 = vunpack.c.l.b16 %v726
    %v1313 = vunpack.c.h.b16 %v726
    %v1314 = vunpack.c.l.b16 %v727
    %v1315 = vunpack.c.h.b16 %v727
    %v1316 = vunpack.c.l.b16 %v728
    %v1317 = vunpack.c.h.b16 %v728
    %v1318 = vunpack.c.l.b16 %v729
    %v1319 = vunpack.c.h.b16 %v729
    %v1320 = vunpack.c.l.b16 %v730
    %v1321 = vunpack.c.h.b16 %v730
    %v1322 = vunpack.c.l.b16 %v731
    %v1323 = vunpack.c.h.b16 %v731
    %v1324 = vunpack.c.l.b16 %v732
    %v1325 = vunpack.c.h.b16 %v732
    %v1326 = vunpack.c.l.b16 %v733
    %v1327 = vunpack.c.h.b16 %v733
    %v1328 = vunpack.c.l.b16 %v734
    %v1329 = vunpack.c.h.b16 %v734
    %v1330 = vunpack.c.l.b16 %v735
    %v1331 = vunpack.c.h.b16 %v735
    %v1332 = vunpack.c.l.b16 %v736
    %v1333 = vunpack.c.h.b16 %v736
    %v1334 = vunpack.c.l.b16 %v737
    %v1335 = vunpack.c.h.b16 %v737
    %v1336 = vunpack.c.l.b16 %v738
    %v1337 = vunpack.c.h.b16 %v738
    %v1338 = vunpack.c.l.b16 %v739
    %v1339 = vunpack.c.h.b16 %v739
    %v1340 = vunpack.c.l.b16 %v740
    %v1341 = vunpack.c.h.b16 %v740
    %v1342 = vunpack.c.l.b16 %v741
    %v1343 = vunpack.c.h.b16 %v741
    %v1344 = vunpack.c.l.b16 %v742
    %v1345 = vunpack.c.h.b16 %v742
    %v1346 = vunpack.c.l.b16 %v743
    %v1347 = vunpack.c.h.b16 %v743
    %v1348 = vunpack.c.l.b16 %v744
    %v1349 = vunpack.c.h.b16 %v744
    %v1350 = vunpack.c.l.b16 %v745
    %v1351 = vunpack.c.h.b16 %v745
    %v1352 = vunpack.c.l.b16 %v746
    %v1353 = vunpack.c.h.b16 %v746
    %v1354 = vunpack.c.l.b16 %v747
    %v1355 = vunpack.c.h.b16 %v747
    %v1356 = vunpack.c.l.b16 %v748
    %v1357 = vunpack.c.h.b16 %v748
    %v1358 = vunpack.c.l.b16 %v749
    %v1359 = vunpack.c.h.b16 %v749
    %v1360 = vunpack.c.l.b16 %v750
    %v1361 = vunpack.c.h.b16 %v750
    %v1362 = vunpack.c.l.b16 %v751
    %v1363 = vunpack.c.h.b16 %v751
    %v1364 = vunpack.c.l.b16 %v752
    %v1365 = vunpack.c.h.b16 %v752
    %v1366 = vunpack.c.l.b16 %v753
    %v1367 = vunpack.c.h.b16 %v753
    %v1368 = vunpack.c.l.b16 %v754
    %v1369 = vunpack.c.h.b16 %v754
    %v1370 = vunpack.c.l.b16 %v755
    %v1371 = vunpack.c.h.b16 %v755
    %v1372 = vunpack.c.l.b16 %v756
    %v1373 = vunpack.c.h.b16 %v756
    %v1374 = vunpack.c.l.b16 %v757
    %v1375 = vunpack.c.h.b16 %v757
    %v1376 = vunpack.c.l.b16 %v758
    %v1377 = vunpack.c.h.b16 %v758
    %v1378 = vunpack.c.l.b16 %v759
    %v1379 = vunpack.c.h.b16 %v759
    %v1380 = vunpack.c.l.b16 %v760
    %v1381 = vunpack.c.h.b16 %v760
    %v1382 = vunpack.c.l.b16 %v761
    %v1383 = vunpack.c.h.b16 %v761
    %v1384 = vunpack.c.l.b16 %v762
    %v1385 = vunpack.c.h.b16 %v762
    %v1386 = vunpack.c.l.b16 %v763
    %v1387 = vunpack.c.h.b16 %v763
    %v1388 = vunpack.c.l.b16 %v764
    %v1389 = vunpack.c.h.b16 %v764
    %v1390 = vunpack.c.l.b16 %v765
    %v1391 = vunpack.c.h.b16 %v765
    %v1392 = vunpack.c.l.b16 %v766
    %v1393 = vunpack.c.h.b16 %v766
    %v1394 = vunpack.c.l.b16 %v767
    %v1395 = vunpack.c.h.b16 %v767
    %v1396 = vunpack.c.l.b16 %v768
    %v1397 = vunpack.c.h.b16 %v768
    %v1398 = vunpack.c.l.b16 %v769
    %v1399 = vunpack.c.h.b16 %v769
    %v1400 = vunpack.c.l.b16 %v770
    %v1401 = vunpack.c.h.b16 %v770
    %v1402 = vunpack.c.l.b16 %v771
    %v1403 = vunpack.c.h.b16 %v771
    %v1404 = vunpack.c.l.b16 %v772
    %v1405 = vunpack.c.h.b16 %v772
    %v1406 = vunpack.c.l.b16 %v773
    %v1407 = vunpack.c.h.b16 %v773
    %v1408 = vunpack.c.l.b16 %v774
    %v1409 = vunpack.c.h.b16 %v774
    %v1410 = vunpack.c.l.b16 %v775
    %v1411 = vunpack.c.h.b16 %v775
    %v1412 = vunpack.c.l.b16 %v776
    %v1413 = vunpack.c.h.b16 %v776
    %v1414 = vunpack.c.l.b16 %v777
    %v1415 = vunpack.c.h.b16 %v777
    %v1416 = vunpack.c.l.b16 %v778
    %v1417 = vunpack.c.h.b16 %v778
    %v1418 = vunpack.c.l.b16 %v779
    %v1419 = vunpack.c.h.b16 %v779
    %v1420 = vunpack.c.l.b16 %v780
    %v1421 = vunpack.c.h.b16 %v780
    %v1422 = vunpack.c.l.b16 %v781
    %v1423 = vunpack.c.h.b16 %v781
    %v1424 = vunpack.c.l.b16 %v782
    %v1425 = vunpack.c.h.b16 %v782
    %v1426 = vunpack.c.l.b16 %v783
    %v1427 = vunpack.c.h.b16 %v783
    %v1428 = vunpack.c.l.b16 %v784
    %v1429 = vunpack.c.h.b16 %v784
    %v1430 = vunpack.c.l.b16 %v785
    %v1431 = vunpack.c.h.b16 %v785
    %v1432 = vunpack.c.l.b16 %v786
    %v1433 = vunpack.c.h.b16 %v786
    %v1434 = vunpack.c.l.b16 %v787
    %v1435 = vunpack.c.h.b16 %v787
    %v1436 = vunpack.c.l.b16 %v788
    %v1437 = vunpack.c.h.b16 %v788
    %v1438 = vunpack.c.l.b16 %v789
    %v1439 = vunpack.c.h.b16 %v789
    %v1440 = vunpack.c.l.b16 %v790
    %v1441 = vunpack.c.h.b16 %v790
    %v1442 = vunpack.c.l.b16 %v791
    %v1443 = vunpack.c.h.b16 %v791
    %v1444 = vunpack.c.l.b16 %v792
    %v1445 = vunpack.c.h.b16 %v792
    %v1446 = vunpack.c.l.b16 %v793
    %v1447 = vunpack.c.h.b16 %v793
    %v1448 = vunpack.c.l.b16 %v794
    %v1449 = vunpack.c.h.b16 %v794
    %v1450 = vunpack.c.l.b16 %v795
    %v1451 = vunpack.c.h.b16 %v795
    %v1452 = vunpack.c.l.b16 %v796
    %v1453 = vunpack.c.h.b16 %v796
    %v1454 = vunpack.c.l.b16 %v797
    %v1455 = vunpack.c.h.b16 %v797
    %v1456 = vunpack.c.l.b16 %v798
    %v1457 = vunpack.c.h.b16 %v798
    %v1458 = vunpack.c.l.b16 %v799
    %v1459 = vunpack.c.h.b16 %v799
    %v1460 = vunpack.c.l.b16 %v800
    %v1461 = vunpack.c.h.b16 %v800
    %v1462 = vunpack.c.l.b16 %v801
    %v1463 = vunpack.c.h.b16 %v801
    %v1464 = vunpack.c.l.b16 %v802
    %v1465 = vunpack.c.h.b16 %v802
    %v1466 = vunpack.c.l.b16 %v803
    %v1467 = vunpack.c.h.b16 %v803
    %v1468 = vunpack.c.l.b16 %v804
    %v1469 = vunpack.c.h.b16 %v804
    %v1470 = vunpack.c.l.b16 %v805
    %v1471 = vunpack.c.h.b16 %v805
    %v1472 = vunpack.c.l.b16 %v806
    %v1473 = vunpack.c.h.b16 %v806
    %v1474 = vunpack.c.l.b16 %v807
    %v1475 = vunpack.c.h.b16 %v807
    %v1476 = vunpack.c.l.b16 %v808
    %v1477 = vunpack.c.h.b16 %v808
    %v1478 = vunpack.c.l.b16 %v809
    %v1479 = vunpack.c.h.b16 %v809
    %v1480 = vunpack.c.l.b16 %v810
    %v1481 = vunpack.c.h.b16 %v810
    %v1482 = vunpack.c.l.b16 %v811
    %v1483 = vunpack.c.h.b16 %v811
    %v1484 = vunpack.c.l.b16 %v812
    %v1485 = vunpack.c.h.b16 %v812
    %v1486 = vunpack.c.l.b16 %v813
    %v1487 = vunpack.c.h.b16 %v813
    %v1488 = vunpack.c.l.b16 %v814
    %v1489 = vunpack.c.h.b16 %v814
    %v1490 = vunpack.c.l.b16 %v815
    %v1491 = vunpack.c.h.b16 %v815
    %v1492 = vunpack.c.l.b16 %v816
    %v1493 = vunpack.c.h.b16 %v816
    %v1494 = vunpack.c.l.b16 %v817
    %v1495 = vunpack.c.h.b16 %v817
    %v1496 = vunpack.c.l.b16 %v818
    %v1497 = vunpack.c.h.b16 %v818
    %v1498 = vunpack.c.l.b16 %v819
    %v1499 = vunpack.c.h.b16 %v819
    %v1500 = vunpack.c.l.b16 %v820
    %v1501 = vunpack.c.h.b16 %v820
    %v1502 = vunpack.c.l.b16 %v821
    %v1503 = vunpack.c.h.b16 %v821
    %v1504 = vunpack.c.l.b16 %v822
    %v1505 = vunpack.c.h.b16 %v822
    %v1506 = vunpack.c.l.b16 %v823
    %v1507 = vunpack.c.h.b16 %v823
    %v1508 = vunpack.c.l.b16 %v824
    %v1509 = vunpack.c.h.b16 %v824
    %v1510 = vunpack.c.l.b16 %v825
    %v1511 = vunpack.c.h.b16 %v825
    %v1512 = vunpack.c.l.b16 %v826
    %v1513 = vunpack.c.h.b16 %v826
    %v1514 = vunpack.c.l.b16 %v827
    %v1515 = vunpack.c.h.b16 %v827
    %v1516 = vunpack.c.l.b16 %v828
    %v1517 = vunpack.c.h.b16 %v828
    %v1518 = vunpack.c.l.b16 %v829
    %v1519 = vunpack.c.h.b16 %v829
    %v1520 = vunpack.c.l.b16 %v830
    %v1521 = vunpack.c.h.b16 %v830
    %v1522 = vunpack.c.l.b16 %v831
    %v1523 = vunpack.c.h.b16 %v831
    %v1524 = vunpack.c.l.b16 %v832
    %v1525 = vunpack.c.h.b16 %v832
    %v1526 = vunpack.c.l.b16 %v833
    %v1527 = vunpack.c.h.b16 %v833
    %v1528 = vunpack.c.l.b16 %v834
    %v1529 = vunpack.c.h.b16 %v834
    %v1530 = vunpack.c.l.b16 %v835
    %v1531 = vunpack.c.h.b16 %v835
    %v1532 = vunpack.c.l.b16 %v836
    %v1533 = vunpack.c.h.b16 %v836
    %v1534 = vunpack.c.l.b16 %v837
    %v1535 = vunpack.c.h.b16 %v837
    %v1536 = vunpack.c.l.b16 %v838
    %v1537 = vunpack.c.h.b16 %v838
    %v1538 = vunpack.c.l.b16 %v839
    %v1539 = vunpack.c.h.b16 %v839
    %v1540 = vunpack.c.l.b16 %v840
    %v1541 = vunpack.c.h.b16 %v840
    %v1542 = vunpack.c.l.b16 %v841
    %v1543 = vunpack.c.h.b16 %v841
    %v1544 = vunpack.c.l.b16 %v842
    %v1545 = vunpack.c.h.b16 %v842
    %v1546 = vunpack.c.l.b16 %v843
    %v1547 = vunpack.c.h.b16 %v843
    %v1548 = vunpack.c.l.b16 %v844
    %v1549 = vunpack.c.h.b16 %v844
    %v1550 = vunpack.c.l.b16 %v845
    %v1551 = vunpack.c.h.b16 %v845
    %v1552 = vunpack.c.l.b16 %v846
    %v1553 = vunpack.c.h.b16 %v846
    %v1554 = vunpack.c.l.b16 %v847
    %v1555 = vunpack.c.h.b16 %v847
    %v1556 = vunpack.c.l.b16 %v848
    %v1557 = vunpack.c.h.b16 %v848
    %v1558 = vunpack.c.l.b16 %v849
    %v1559 = vunpack.c.h.b16 %v849
    %v1560 = vunpack.c.l.b16 %v850
    %v1561 = vunpack.c.h.b16 %v850
    %v1562 = vunpack.c.l.b16 %v851
    %v1563 = vunpack.c.h.b16 %v851
    %v1564 = vunpack.c.l.b16 %v852
    %v1565 = vunpack.c.h.b16 %v852
    %v1566 = vunpack.c.l.b16 %v853
    %v1567 = vunpack.c.h.b16 %v853
    %v1568 = vunpack.c.l.b16 %v854
    %v1569 = vunpack.c.h.b16 %v854
    %v1570 = vunpack.c.l.b16 %v855
    %v1571 = vunpack.c.h.b16 %v855
    %v1572 = vunpack.c.l.b16 %v856
    %v1573 = vunpack.c.h.b16 %v856
    %v1574 = vunpack.c.l.b16 %v857
    %v1575 = vunpack.c.h.b16 %v857
    %v1576 = vunpack.c.l.b16 %v858
    %v1577 = vunpack.c.h.b16 %v858
    %v1578 = vunpack.c.l.b16 %v859
    %v1579 = vunpack.c.h.b16 %v859
    %v1580 = vunpack.c.l.b16 %v860
    %v1581 = vunpack.c.h.b16 %v860
    %v1582 = vunpack.c.l.b16 %v861
    %v1583 = vunpack.c.h.b16 %v861
    %v1584 = vunpack.c.l.b16 %v862
    %v1585 = vunpack.c.h.b16 %v862
    %v1586 = vunpack.c.l.b16 %v863
    %v1587 = vunpack.c.h.b16 %v863
    %v1588 = vunpack.c.l.b16 %v864
    %v1589 = vunpack.c.h.b16 %v864
    %v1590 = vunpack.c.l.b16 %v865
    %v1591 = vunpack.c.h.b16 %v865
    %v1592 = vunpack.c.l.b16 %v866
    %v1593 = vunpack.c.h.b16 %v866
    %v1594 = vunpack.c.l.b16 %v867
    %v1595 = vunpack.c.h.b16 %v867
    %v1596 = vunpack.c.l.b16 %v868
    %v1597 = vunpack.c.h.b16 %v868
    %v1598 = vunpack.c.l.b16 %v869
    %v1599 = vunpack.c.h.b16 %v869
    %v1600 = vunpack.c.l.b16 %v870
    %v1601 = vunpack.c.h.b16 %v870
    %v1602 = vunpack.c.l.b16 %v871
    %v1603 = vunpack.c.h.b16 %v871
    %v1604 = vunpack.c.l.b16 %v872
    %v1605 = vunpack.c.h.b16 %v872
    %v1606 = vunpack.c.l.b16 %v873
    %v1607 = vunpack.c.h.b16 %v873
    %v1608 = vunpack.c.l.b16 %v874
    %v1609 = vunpack.c.h.b16 %v874
    %v1610 = vunpack.c.l.b16 %v875
    %v1611 = vunpack.c.h.b16 %v875
    %v1612 = vunpack.c.l.b16 %v876
    %v1613 = vunpack.c.h.b16 %v876
    %v1614 = vunpack.c.l.b16 %v877
    %v1615 = vunpack.c.h.b16 %v877
    %v1616 = vunpack.c.l.b16 %v878
    %v1617 = vunpack.c.h.b16 %v878
    %v1618 = vunpack.c.l.b16 %v879
    %v1619 = vunpack.c.h.b16 %v879
    %v1620 = vunpack.c.l.b16 %v880
    %v1621 = vunpack.c.h.b16 %v880
    %v1622 = vunpack.c.l.b16 %v881
    %v1623 = vunpack.c.h.b16 %v881
    %v1624 = vunpack.c.l.b16 %v882
    %v1625 = vunpack.c.h.b16 %v882
    %v1626 = vunpack.c.l.b16 %v883
    %v1627 = vunpack.c.h.b16 %v883
    %v1628 = vunpack.c.l.b16 %v884
    %v1629 = vunpack.c.h.b16 %v884
    %v1630 = vunpack.c.l.b16 %v885
    %v1631 = vunpack.c.h.b16 %v885
    %v1632 = vunpack.c.l.b16 %v886
    %v1633 = vunpack.c.h.b16 %v886
    %v1634 = vunpack.c.l.b16 %v887
    %v1635 = vunpack.c.h.b16 %v887
    %v1636 = vunpack.c.l.b16 %v888
    %v1637 = vunpack.c.h.b16 %v888
    %v1638 = vunpack.c.l.b16 %v889
    %v1639 = vunpack.c.h.b16 %v889
    %v1640 = vunpack.c.l.b16 %v890
    %v1641 = vunpack.c.h.b16 %v890
    %v1642 = vunpack.c.l.b16 %v891
    %v1643 = vunpack.c.h.b16 %v891
    %v1644 = vunpack.c.l.b16 %v892
    %v1645 = vunpack.c.h.b16 %v892
    %v1646 = vunpack.c.l.b16 %v893
    %v1647 = vunpack.c.h.b16 %v893
    %v1648 = vunpack.c.l.b16 %v894
    %v1649 = vunpack.c.h.b16 %v894
    %v1650 = vunpack.c.l.b16 %v895
    %v1651 = vunpack.c.h.b16 %v895
    %v1652 = vunpack.c.l.b16 %v896
    %v1653 = vunpack.c.h.b16 %v896
    %v1654 = vunpack.c.l.b16 %v897
    %v1655 = vunpack.c.h.b16 %v897
    %v1656 = vunpack.c.l.b16 %v898
    %v1657 = vunpack.c.h.b16 %v898
    %v1658 = vunpack.c.l.b16 %v899
    %v1659 = vunpack.c.h.b16 %v899
    %v1660 = vunpack.c.l.b16 %v900
    %v1661 = vunpack.c.h.b16 %v900
    %v1662 = vunpack.c.l.b16 %v901
    %v1663 = vunpack.c.h.b16 %v901
    %v1664 = vunpack.c.l.b16 %v902
    %v1665 = vunpack.c.h.b16 %v902
    %v1666 = vunpack.c.l.b16 %v903
    %v1667 = vunpack.c.h.b16 %v903
    %v1668 = vunpack.c.l.b16 %v904
    %v1669 = vunpack.c.h.b16 %v904
    %v1670 = vunpack.c.l.b16 %v905
    %v1671 = vunpack.c.h.b16 %v905
    %v1672 = vunpack.c.l.b16 %v906
    %v1673 = vunpack.c.h.b16 %v906
    %v1674 = vunpack.c.l.b16 %v907
    %v1675 = vunpack.c.h.b16 %v907
    %v1676 = vunpack.c.l.b16 %v908
    %v1677 = vunpack.c.h.b16 %v908
    %v1678 = vunpack.c.l.b16 %v909
    %v1679 = vunpack.c.h.b16 %v909
    %v1680 = vunpack.c.l.b16 %v910
    %v1681 = vunpack.c.h.b16 %v910
    %v1682 = vunpack.c.l.b16 %v911
    %v1683 = vunpack.c.h.b16 %v911
    %v1684 = vunpack.c.l.b16 %v912
    %v1685 = vunpack.c.h.b16 %v912
    %v1686 = vunpack.c.l.b16 %v913
    %v1687 = vunpack.c.h.b16 %v913
    %v1688 = vunpack.c.l.b16 %v914
    %v1689 = vunpack.c.h.b16 %v914
    %v1690 = vunpack.c.l.b16 %v915
    %v1691 = vunpack.c.h.b16 %v915
    %v1692 = vunpack.c.l.b16 %v916
    %v1693 = vunpack.c.h.b16 %v916
    %v1694 = vpack.c.b16 %v1186, %v1182
    %v1695 = vpack.c.b16 %v1187, %v1183
    %v1696 = vpack.c.b16 %v1188, %v1184
    %v1697 = vpack.c.b16 %v1189, %v1185
    %v1698 = vpack.c.b16 %v1194, %v1190
    %v1699 = vpack.c.b16 %v1195, %v1191
    %v1700 = vpack.c.b16 %v1196, %v1192
    %v1701 = vpack.c.b16 %v1197, %v1193
    %v1702 = vpack.c.b16 %v1202, %v1198
    %v1703 = vpack.c.b16 %v1203, %v1199
    %v1704 = vpack.c.b16 %v1204, %v1200
    %v1705 = vpack.c.b16 %v1205, %v1201
    %v1706 = vpack.c.b16 %v1210, %v1206
    %v1707 = vpack.c.b16 %v1211, %v1207
    %v1708 = vpack.c.b16 %v1212, %v1208
    %v1709 = vpack.c.b16 %v1213, %v1209
    %v1710 = vpack.c.b16 %v1218, %v1214
    %v1711 = vpack.c.b16 %v1219, %v1215
    %v1712 = vpack.c.b16 %v1220, %v1216
    %v1713 = vpack.c.b16 %v1221, %v1217
    %v1714 = vpack.c.b16 %v1226, %v1222
    %v1715 = vpack.c.b16 %v1227, %v1223
    %v1716 = vpack.c.b16 %v1228, %v1224
    %v1717 = vpack.c.b16 %v1229, %v1225
    %v1718 = vpack.c.b16 %v1234, %v1230
    %v1719 = vpack.c.b16 %v1235, %v1231
    %v1720 = vpack.c.b16 %v1236, %v1232
    %v1721 = vpack.c.b16 %v1237, %v1233
    %v1722 = vpack.c.b16 %v1242, %v1238
    %v1723 = vpack.c.b16 %v1243, %v1239
    %v1724 = vpack.c.b16 %v1244, %v1240
    %v1725 = vpack.c.b16 %v1245, %v1241
    %v1726 = vpack.c.b16 %v1250, %v1246
    %v1727 = vpack.c.b16 %v1251, %v1247
    %v1728 = vpack.c.b16 %v1252, %v1248
    %v1729 = vpack.c.b16 %v1253, %v1249
    %v1730 = vpack.c.b16 %v1258, %v1254
    %v1731 = vpack.c.b16 %v1259, %v1255
    %v1732 = vpack.c.b16 %v1260, %v1256
    %v1733 = vpack.c.b16 %v1261, %v1257
    %v1734 = vpack.c.b16 %v1266, %v1262
    %v1735 = vpack.c.b16 %v1267, %v1263
    %v1736 = vpack.c.b16 %v1268, %v1264
    %v1737 = vpack.c.b16 %v1269, %v1265
    %v1738 = vpack.c.b16 %v1274, %v1270
    %v1739 = vpack.c.b16 %v1275, %v1271
    %v1740 = vpack.c.b16 %v1276, %v1272
    %v1741 = vpack.c.b16 %v1277, %v1273
    %v1742 = vpack.c.b16 %v1282, %v1278
    %v1743 = vpack.c.b16 %v1283, %v1279
    %v1744 = vpack.c.b16 %v1284, %v1280
    %v1745 = vpack.c.b16 %v1285, %v1281
    %v1746 = vpack.c.b16 %v1290, %v1286
    %v1747 = vpack.c.b16 %v1291, %v1287
    %v1748 = vpack.c.b16 %v1292, %v1288
    %v1749 = vpack.c.b16 %v1293, %v1289
    %v1750 = vpack.c.b16 %v1298, %v1294
    %v1751 = vpack.c.b16 %v1299, %v1295
    %v1752 = vpack.c.b16 %v1300, %v1296
    %v1753 = vpack.c.b16 %v1301, %v1297
    %v1754 = vpack.c.b16 %v1306, %v1302
    %v1755 = vpack.c.b16 %v1307, %v1303
    %v1756 = vpack.c.b16 %v1308, %v1304
    %v1757 = vpack.c.b16 %v1309, %v1305
    %v1758 = vpack.c.b16 %v1314, %v1310
    %v1759 = vpack.c.b16 %v1315, %v1311
    %v1760 = vpack.c.b16 %v1316, %v1312
    %v1761 = vpack.c.b16 %v1317, %v1313
    %v1762 = vpack.c.b16 %v1322, %v1318
    %v1763 = vpack.c.b16 %v1323, %v1319
    %v1764 = vpack.c.b16 %v1324, %v1320
    %v1765 = vpack.c.b16 %v1325, %v1321
    %v1766 = vpack.c.b16 %v1330, %v1326
    %v1767 = vpack.c.b16 %v1331, %v1327
    %v1768 = vpack.c.b16 %v1332, %v1328
    %v1769 = vpack.c.b16 %v1333, %v1329
    %v1770 = vpack.c.b16 %v1338, %v1334
    %v1771 = vpack.c.b16 %v1339, %v1335
    %v1772 = vpack.c.b16 %v1340, %v1336
    %v1773 = vpack.c.b16 %v1341, %v1337
    %v1774 = vpack.c.b16 %v1346, %v1342
    %v1775 = vpack.c.b16 %v1347, %v1343
    %v1776 = vpack.c.b16 %v1348, %v1344
    %v1777 = vpack.c.b16 %v1349, %v1345
    %v1778 = vpack.c.b16 %v1354, %v1350
    %v1779 = vpack.c.b16 %v1355, %v1351
    %v1780 = vpack.c.b16 %v1356, %v1352
    %v1781 = vpack.c.b16 %v1357, %v1353
    %v1782 = vpack.c.b16 %v1362, %v1358
    %v1783 = vpack.c.b16 %v1363, %v1359
    %v1784 = vpack.c.b16 %v1364, %v1360
    %v1785 = vpack.c.b16 %v1365, %v1361
    %v1786 = vpack.c.b16 %v1370, %v1366
    %v1787 = vpack.c.b16 %v1371, %v1367
    %v1788 = vpack.c.b16 %v1372, %v1368
    %v1789 = vpack.c.b16 %v1373, %v1369
    %v1790 = vpack.c.b16 %v1378, %v1374
    %v1791 = vpack.c.b16 %v1379, %v1375
    %v1792 = vpack.c.b16 %v1380, %v1376
    %v1793 = vpack.c.b16 %v1381, %v1377
    %v1794 = vpack.c.b16 %v1386, %v1382
    %v1795 = vpack.c.b16 %v1387, %v1383
    %v1796 = vpack.c.b16 %v1388, %v1384
    %v1797 = vpack.c.b16 %v1389, %v1385
    %v1798 = vpack.c.b16 %v1394, %v1390
    %v1799 = vpack.c.b16 %v1395, %v1391
    %v1800 = vpack.c.b16 %v1396, %v1392
    %v1801 = vpack.c.b16 %v1397, %v1393
    %v1802 = vpack.c.b16 %v1402, %v1398
    %v1803 = vpack.c.b16 %v1403, %v1399
    %v1804 = vpack.c.b16 %v1404, %v1400
    %v1805 = vpack.c.b16 %v1405, %v1401
    %v1806 = vpack.c.b16 %v1410, %v1406
    %v1807 = vpack.c.b16 %v1411, %v1407
    %v1808 = vpack.c.b16 %v1412, %v1408
    %v1809 = vpack.c.b16 %v1413, %v1409
    %v1810 = vpack.c.b16 %v1418, %v1414
    %v1811 = vpack.c.b16 %v1419, %v1415
    %v1812 = vpack.c.b16 %v1420, %v1416
    %v1813 = vpack.c.b16 %v1421, %v1417
    %v1814 = vpack.c.b16 %v1426, %v1422
    %v1815 = vpack.c.b16 %v1427, %v1423
    %v1816 = vpack.c.b16 %v1428, %v1424
    %v1817 = vpack.c.b16 %v1429, %v1425
    %v1818 = vpack.c.b16 %v1434, %v1430
    %v1819 = vpack.c.b16 %v1435, %v1431
    %v1820 = vpack.c.b16 %v1436, %v1432
    %v1821 = vpack.c.b16 %v1437, %v1433
    %v1822 = vpack.c.b16 %v1442, %v1438
    %v1823 = vpack.c.b16 %v1443, %v1439
    %v1824 = vpack.c.b16 %v1444, %v1440
    %v1825 = vpack.c.b16 %v1445, %v1441
    %v1826 = vpack.c.b16 %v1450, %v1446
    %v1827 = vpack.c.b16 %v1451, %v1447
    %v1828 = vpack.c.b16 %v1452, %v1448
    %v1829 = vpack.c.b16 %v1453, %v1449
    %v1830 = vpack.c.b16 %v1458, %v1454
    %v1831 = vpack.c.b16 %v1459, %v1455
    %v1832 = vpack.c.b16 %v1460, %v1456
    %v1833 = vpack.c.b16 %v1461, %v1457
    %v1834 = vpack.c.b16 %v1466, %v1462
    %v1835 = vpack.c.b16 %v1467, %v1463
    %v1836 = vpack.c.b16 %v1468, %v1464
    %v1837 = vpack.c.b16 %v1469, %v1465
    %v1838 = vpack.c.b16 %v1474, %v1470
    %v1839 = vpack.c.b16 %v1475, %v1471
    %v1840 = vpack.c.b16 %v1476, %v1472
    %v1841 = vpack.c.b16 %v1477, %v1473
    %v1842 = vpack.c.b16 %v1482, %v1478
    %v1843 = vpack.c.b16 %v1483, %v1479
    %v1844 = vpack.c.b16 %v1484, %v1480
    %v1845 = vpack.c.b16 %v1485, %v1481
    %v1846 = vpack.c.b16 %v1490, %v1486
    %v1847 = vpack.c.b16 %v1491, %v1487
    %v1848 = vpack.c.b16 %v1492, %v1488
    %v1849 = vpack.c.b16 %v1493, %v1489
    %v1850 = vpack.c.b16 %v1498, %v1494
    %v1851 = vpack.c.b16 %v1499, %v1495
    %v1852 = vpack.c.b16 %v1500, %v1496
    %v1853 = vpack.c.b16 %v1501, %v1497
    %v1854 = vpack.c.b16 %v1506, %v1502
    %v1855 = vpack.c.b16 %v1507, %v1503
    %v1856 = vpack.c.b16 %v1508, %v1504
    %v1857 = vpack.c.b16 %v1509, %v1505
    %v1858 = vpack.c.b16 %v1514, %v1510
    %v1859 = vpack.c.b16 %v1515, %v1511
    %v1860 = vpack.c.b16 %v1516, %v1512
    %v1861 = vpack.c.b16 %v1517, %v1513
    %v1862 = vpack.c.b16 %v1522, %v1518
    %v1863 = vpack.c.b16 %v1523, %v1519
    %v1864 = vpack.c.b16 %v1524, %v1520
    %v1865 = vpack.c.b16 %v1525, %v1521
    %v1866 = vpack.c.b16 %v1530, %v1526
    %v1867 = vpack.c.b16 %v1531, %v1527
    %v1868 = vpack.c.b16 %v1532, %v1528
    %v1869 = vpack.c.b16 %v1533, %v1529
    %v1870 = vpack.c.b16 %v1538, %v1534
    %v1871 = vpack.c.b16 %v1539, %v1535
    %v1872 = vpack.c.b16 %v1540, %v1536
    %v1873 = vpack.c.b16 %v1541, %v1537
    %v1874 = vpack.c.b16 %v1546, %v1542
    %v1875 = vpack.c.b16 %v1547, %v1543
    %v1876 = vpack.c.b16 %v1548, %v1544
    %v1877 = vpack.c.b16 %v1549, %v1545
    %v1878 = vpack.c.b16 %v1554, %v1550
    %v1879 = vpack.c.b16 %v1555, %v1551
    %v1880 = vpack.c.b16 %v1556, %v1552
    %v1881 = vpack.c.b16 %v1557, %v1553
    %v1882 = vpack.c.b16 %v1562, %v1558
    %v1883 = vpack.c.b16 %v1563, %v1559
    %v1884 = vpack.c.b16 %v1564, %v1560
    %v1885 = vpack.c.b16 %v1565, %v1561
    %v1886 = vpack.c.b16 %v1570, %v1566
    %v1887 = vpack.c.b16 %v1571, %v1567
    %v1888 = vpack.c.b16 %v1572, %v1568
    %v1889 = vpack.c.b16 %v1573, %v1569
    %v1890 = vpack.c.b16 %v1578, %v1574
    %v1891 = vpack.c.b16 %v1579, %v1575
    %v1892 = vpack.c.b16 %v1580, %v1576
    %v1893 = vpack.c.b16 %v1581, %v1577
    %v1894 = vpack.c.b16 %v1586, %v1582
    %v1895 = vpack.c.b16 %v1587, %v1583
    %v1896 = vpack.c.b16 %v1588, %v1584
    %v1897 = vpack.c.b16 %v1589, %v1585
    %v1898 = vpack.c.b16 %v1594, %v1590
    %v1899 = vpack.c.b16 %v1595, %v1591
    %v1900 = vpack.c.b16 %v1596, %v1592
    %v1901 = vpack.c.b16 %v1597, %v1593
    %v1902 = vpack.c.b16 %v1602, %v1598
    %v1903 = vpack.c.b16 %v1603, %v1599
    %v1904 = vpack.c.b16 %v1604, %v1600
    %v1905 = vpack.c.b16 %v1605, %v1601
    %v1906 = vpack.c.b16 %v1610, %v1606
    %v1907 = vpack.c.b16 %v1611, %v1607
    %v1908 = vpack.c.b16 %v1612, %v1608
    %v1909 = vpack.c.b16 %v1613, %v1609
    %v1910 = vpack.c.b16 %v1618, %v1614
    %v1911 = vpack.c.b16 %v1619, %v1615
    %v1912 = vpack.c.b16 %v1620, %v1616
    %v1913 = vpack.c.b16 %v1621, %v1617
    %v1914 = vpack.c.b16 %v1626, %v1622
    %v1915 = vpack.c.b16 %v1627, %v1623
    %v1916 = vpack.c.b16 %v1628, %v1624
    %v1917 = vpack.c.b16 %v1629, %v1625
    %v1918 = vpack.c.b16 %v1634, %v1630
    %v1919 = vpack.c.b16 %v1635, %v1631
    %v1920 = vpack.c.b16 %v1636, %v1632
    %v1921 = vpack.c.b16 %v1637, %v1633
    %v1922 = vpack.c.b16 %v1642, %v1638
    %v1923 = vpack.c.b16 %v1643, %v1639
    %v1924 = vpack.c.b16 %v1644, %v1640
    %v1925 = vpack.c.b16 %v1645, %v1641
    %v1926 = vpack.c.b16 %v1650, %v1646
    %v1927 = vpack.c.b16 %v1651, %v1647
    %v1928 = vpack.c.b16 %v1652, %v1648
    %v1929 = vpack.c.b16 %v1653, %v1649
    %v1930 = vpack.c.b16 %v1658, %v1654
    %v1931 = vpack.c.b16 %v1659, %v1655
    %v1932 = vpack.c.b16 %v1660, %v1656
    %v1933 = vpack.c.b16 %v1661, %v1657
    %v1934 = vpack.c.b16 %v1666, %v1662
    %v1935 = vpack.c.b16 %v1667, %v1663
    %v1936 = vpack.c.b16 %v1668, %v1664
    %v1937 = vpack.c.b16 %v1669, %v1665
    %v1938 = vpack.c.b16 %v1674, %v1670
    %v1939 = vpack.c.b16 %v1675, %v1671
    %v1940 = vpack.c.b16 %v1676, %v1672
    %v1941 = vpack.c.b16 %v1677, %v1673
    %v1942 = vpack.c.b16 %v1682, %v1678
    %v1943 = vpack.c.b16 %v1683, %v1679
    %v1944 = vpack.c.b16 %v1684, %v1680
    %v1945 = vpack.c.b16 %v1685, %v1681
    %v1946 = vpack.c.b16 %v1690, %v1686
    %v1947 = vpack.c.b16 %v1691, %v1687
    %v1948 = vpack.c.b16 %v1692, %v1688
    %v1949 = vpack.c.b16 %v1693, %v1689
    %2206 = vmatpush.bf16.msra.mxu0 %v1722
    %2207 = vmatpush.bf16.msra.mxu0 %v1718
    %2208 = vmatpush.bf16.msra.mxu0 %v1714
    %2209 = vmatpush.bf16.msra.mxu0 %v1710
    %2210 = vmatpush.bf16.msra.mxu0 %v1706
    %2211 = vmatpush.bf16.msra.mxu0 %v1702
    %2212 = vmatpush.bf16.msra.mxu0 %v1698
    %2213 = vmatpush.bf16.msra.mxu0 %v1694
    %2214 = vmatmul.bf16.gmra.mxu0 %v653
    %v2215 = vpop.f32.mrf.mxu0
    %v2216 = vadd.f32 %v918, %v2215
    %v2217 = vpop.f32.mrf.mxu0
    %2218 = vdwg.mxu0
    %2219 = vmatpush.bf16.msra.mxu0 %v1754
    %2220 = vmatpush.bf16.msra.mxu0 %v1750
    %2221 = vmatpush.bf16.msra.mxu0 %v1746
    %2222 = vmatpush.bf16.msra.mxu0 %v1742
    %2223 = vmatpush.bf16.msra.mxu0 %v1738
    %2224 = vmatpush.bf16.msra.mxu0 %v1734
    %2225 = vmatpush.bf16.msra.mxu0 %v1730
    %2226 = vmatpush.bf16.msra.mxu0 %v1726
    %2227 = vmatmul.bf16.gmra.mxu0 %v654
    %v2228 = vpop.f32.mrf.mxu0
    %v2229 = vadd.f32 %v2216, %v2228
    %v2230 = vpop.f32.mrf.mxu0
    %2231 = vdwg.mxu0
    %2232 = vmatpush.bf16.msra.mxu0 %v1786
    %2233 = vmatpush.bf16.msra.mxu0 %v1782
    %2234 = vmatpush.bf16.msra.mxu0 %v1778
    %2235 = vmatpush.bf16.msra.mxu0 %v1774
    %2236 = vmatpush.bf16.msra.mxu0 %v1770
    %2237 = vmatpush.bf16.msra.mxu0 %v1766
    %2238 = vmatpush.bf16.msra.mxu0 %v1762
    %2239 = vmatpush.bf16.msra.mxu0 %v1758
    %2240 = vmatmul.bf16.gmra.mxu0 %v655
    %v2241 = vpop.f32.mrf.mxu0
    %v2242 = vadd.f32 %v2229, %v2241
    %v2243 = vpop.f32.mrf.mxu0
    %2244 = vdwg.mxu0
    %2245 = vmatpush.bf16.msra.mxu0 %v1818
    %2246 = vmatpush.bf16.msra.mxu0 %v1814
    %2247 = vmatpush.bf16.msra.mxu0 %v1810
    %2248 = vmatpush.bf16.msra.mxu0 %v1806
    %2249 = vmatpush.bf16.msra.mxu0 %v1802
    %2250 = vmatpush.bf16.msra.mxu0 %v1798
    %2251 = vmatpush.bf16.msra.mxu0 %v1794
    %2252 = vmatpush.bf16.msra.mxu0 %v1790
    %2253 = vmatmul.bf16.gmra.mxu0 %v656
    %v2254 = vpop.f32.mrf.mxu0
    %v2255 = vadd.f32 %v2242, %v2254
    %v2256 = vpop.f32.mrf.mxu0
    %2257 = vdwg.mxu0
    %2258 = vmatpush.bf16.msra.mxu0 %v1850
    %2259 = vmatpush.bf16.msra.mxu0 %v1846
    %2260 = vmatpush.bf16.msra.mxu0 %v1842
    %2261 = vmatpush.bf16.msra.mxu0 %v1838
    %2262 = vmatpush.bf16.msra.mxu0 %v1834
    %2263 = vmatpush.bf16.msra.mxu0 %v1830
    %2264 = vmatpush.bf16.msra.mxu0 %v1826
    %2265 = vmatpush.bf16.msra.mxu0 %v1822
    %2266 = vmatmul.bf16.gmra.mxu0 %v657
    %v2267 = vpop.f32.mrf.mxu0
    %v2268 = vadd.f32 %v2255, %v2267
    %v2269 = vpop.f32.mrf.mxu0
    %2270 = vdwg.mxu0
    %2271 = vmatpush.bf16.msra.mxu0 %v1882
    %2272 = vmatpush.bf16.msra.mxu0 %v1878
    %2273 = vmatpush.bf16.msra.mxu0 %v1874
    %2274 = vmatpush.bf16.msra.mxu0 %v1870
    %2275 = vmatpush.bf16.msra.mxu0 %v1866
    %2276 = vmatpush.bf16.msra.mxu0 %v1862
    %2277 = vmatpush.bf16.msra.mxu0 %v1858
    %2278 = vmatpush.bf16.msra.mxu0 %v1854
    %2279 = vmatmul.bf16.gmra.mxu0 %v658
    %v2280 = vpop.f32.mrf.mxu0
    %v2281 = vadd.f32 %v2268, %v2280
    %v2282 = vpop.f32.mrf.mxu0
    %2283 = vdwg.mxu0
    %2284 = vmatpush.bf16.msra.mxu0 %v1914
    %2285 = vmatpush.bf16.msra.mxu0 %v1910
    %2286 = vmatpush.bf16.msra.mxu0 %v1906
    %2287 = vmatpush.bf16.msra.mxu0 %v1902
    %2288 = vmatpush.bf16.msra.mxu0 %v1898
    %2289 = vmatpush.bf16.msra.mxu0 %v1894
    %2290 = vmatpush.bf16.msra.mxu0 %v1890
    %2291 = vmatpush.bf16.msra.mxu0 %v1886
    %2292 = vmatmul.bf16.gmra.mxu0 %v659
    %v2293 = vpop.f32.mrf.mxu0
    %v2294 = vadd.f32 %v2281, %v2293
    %v2295 = vpop.f32.mrf.mxu0
    %2296 = vdwg.mxu0
    %2297 = vmatpush.bf16.msra.mxu0 %v1946
    %2298 = vmatpush.bf16.msra.mxu0 %v1942
    %2299 = vmatpush.bf16.msra.mxu0 %v1938
    %2300 = vmatpush.bf16.msra.mxu0 %v1934
    %2301 = vmatpush.bf16.msra.mxu0 %v1930
    %2302 = vmatpush.bf16.msra.mxu0 %v1926
    %2303 = vmatpush.bf16.msra.mxu0 %v1922
    %2304 = vmatpush.bf16.msra.mxu0 %v1918
    %2305 = vmatmul.bf16.gmra.mxu0 %v660
    %v2306 = vpop.f32.mrf.mxu0
    %v2307 = vadd.f32 %v2294, %v2306
    %v2308 = vpop.f32.mrf.mxu0
    %2309 = vdwg.mxu0
    %2310 = vmatpush.bf16.msra.mxu0 %v1723
    %2311 = vmatpush.bf16.msra.mxu0 %v1719
    %2312 = vmatpush.bf16.msra.mxu0 %v1715
    %2313 = vmatpush.bf16.msra.mxu0 %v1711
    %2314 = vmatpush.bf16.msra.mxu0 %v1707
    %2315 = vmatpush.bf16.msra.mxu0 %v1703
    %2316 = vmatpush.bf16.msra.mxu0 %v1699
    %2317 = vmatpush.bf16.msra.mxu0 %v1695
    %2318 = vmatmul.bf16.gmra.mxu0 %v653
    %v2319 = vpop.f32.mrf.mxu0
    %v2320 = vadd.f32 %v919, %v2319
    %v2321 = vpop.f32.mrf.mxu0
    %2322 = vdwg.mxu0
    %2323 = vmatpush.bf16.msra.mxu0 %v1755
    %2324 = vmatpush.bf16.msra.mxu0 %v1751
    %2325 = vmatpush.bf16.msra.mxu0 %v1747
    %2326 = vmatpush.bf16.msra.mxu0 %v1743
    %2327 = vmatpush.bf16.msra.mxu0 %v1739
    %2328 = vmatpush.bf16.msra.mxu0 %v1735
    %2329 = vmatpush.bf16.msra.mxu0 %v1731
    %2330 = vmatpush.bf16.msra.mxu0 %v1727
    %2331 = vmatmul.bf16.gmra.mxu0 %v654
    %v2332 = vpop.f32.mrf.mxu0
    %v2333 = vadd.f32 %v2320, %v2332
    %v2334 = vpop.f32.mrf.mxu0
    %2335 = vdwg.mxu0
    %2336 = vmatpush.bf16.msra.mxu0 %v1787
    %2337 = vmatpush.bf16.msra.mxu0 %v1783
    %2338 = vmatpush.bf16.msra.mxu0 %v1779
    %2339 = vmatpush.bf16.msra.mxu0 %v1775
    %2340 = vmatpush.bf16.msra.mxu0 %v1771
    %2341 = vmatpush.bf16.msra.mxu0 %v1767
    %2342 = vmatpush.bf16.msra.mxu0 %v1763
    %2343 = vmatpush.bf16.msra.mxu0 %v1759
    %2344 = vmatmul.bf16.gmra.mxu0 %v655
    %v2345 = vpop.f32.mrf.mxu0
    %v2346 = vadd.f32 %v2333, %v2345
    %v2347 = vpop.f32.mrf.mxu0
    %2348 = vdwg.mxu0
    %2349 = vmatpush.bf16.msra.mxu0 %v1819
    %2350 = vmatpush.bf16.msra.mxu0 %v1815
    %2351 = vmatpush.bf16.msra.mxu0 %v1811
    %2352 = vmatpush.bf16.msra.mxu0 %v1807
    %2353 = vmatpush.bf16.msra.mxu0 %v1803
    %2354 = vmatpush.bf16.msra.mxu0 %v1799
    %2355 = vmatpush.bf16.msra.mxu0 %v1795
    %2356 = vmatpush.bf16.msra.mxu0 %v1791
    %2357 = vmatmul.bf16.gmra.mxu0 %v656
    %v2358 = vpop.f32.mrf.mxu0
    %v2359 = vadd.f32 %v2346, %v2358
    %v2360 = vpop.f32.mrf.mxu0
    %2361 = vdwg.mxu0
    %2362 = vmatpush.bf16.msra.mxu0 %v1851
    %2363 = vmatpush.bf16.msra.mxu0 %v1847
    %2364 = vmatpush.bf16.msra.mxu0 %v1843
    %2365 = vmatpush.bf16.msra.mxu0 %v1839
    %2366 = vmatpush.bf16.msra.mxu0 %v1835
    %2367 = vmatpush.bf16.msra.mxu0 %v1831
    %2368 = vmatpush.bf16.msra.mxu0 %v1827
    %2369 = vmatpush.bf16.msra.mxu0 %v1823
    %2370 = vmatmul.bf16.gmra.mxu0 %v657
    %v2371 = vpop.f32.mrf.mxu0
    %v2372 = vadd.f32 %v2359, %v2371
    %v2373 = vpop.f32.mrf.mxu0
    %2374 = vdwg.mxu0
    %2375 = vmatpush.bf16.msra.mxu0 %v1883
    %2376 = vmatpush.bf16.msra.mxu0 %v1879
    %2377 = vmatpush.bf16.msra.mxu0 %v1875
    %2378 = vmatpush.bf16.msra.mxu0 %v1871
    %2379 = vmatpush.bf16.msra.mxu0 %v1867
    %2380 = vmatpush.bf16.msra.mxu0 %v1863
    %2381 = vmatpush.bf16.msra.mxu0 %v1859
    %2382 = vmatpush.bf16.msra.mxu0 %v1855
    %2383 = vmatmul.bf16.gmra.mxu0 %v658
    %v2384 = vpop.f32.mrf.mxu0
    %v2385 = vadd.f32 %v2372, %v2384
    %v2386 = vpop.f32.mrf.mxu0
    %2387 = vdwg.mxu0
    %2388 = vmatpush.bf16.msra.mxu0 %v1915
    %2389 = vmatpush.bf16.msra.mxu0 %v1911
    %2390 = vmatpush.bf16.msra.mxu0 %v1907
    %2391 = vmatpush.bf16.msra.mxu0 %v1903
    %2392 = vmatpush.bf16.msra.mxu0 %v1899
    %2393 = vmatpush.bf16.msra.mxu0 %v1895
    %2394 = vmatpush.bf16.msra.mxu0 %v1891
    %2395 = vmatpush.bf16.msra.mxu0 %v1887
    %2396 = vmatmul.bf16.gmra.mxu0 %v659
    %v2397 = vpop.f32.mrf.mxu0
    %v2398 = vadd.f32 %v2385, %v2397
    %v2399 = vpop.f32.mrf.mxu0
    %2400 = vdwg.mxu0
    %2401 = vmatpush.bf16.msra.mxu0 %v1947
    %2402 = vmatpush.bf16.msra.mxu0 %v1943
    %2403 = vmatpush.bf16.msra.mxu0 %v1939
    %2404 = vmatpush.bf16.msra.mxu0 %v1935
    %2405 = vmatpush.bf16.msra.mxu0 %v1931
    %2406 = vmatpush.bf16.msra.mxu0 %v1927
    %2407 = vmatpush.bf16.msra.mxu0 %v1923
    %2408 = vmatpush.bf16.msra.mxu0 %v1919
    %2409 = vmatmul.bf16.gmra.mxu0 %v660
    %v2410 = vpop.f32.mrf.mxu0
    %v2411 = vadd.f32 %v2398, %v2410
    %v2412 = vpop.f32.mrf.mxu0
    %2413 = vdwg.mxu0
    %2414 = vmatpush.bf16.msra.mxu0 %v1724
    %2415 = vmatpush.bf16.msra.mxu0 %v1720
    %2416 = vmatpush.bf16.msra.mxu0 %v1716
    %2417 = vmatpush.bf16.msra.mxu0 %v1712
    %2418 = vmatpush.bf16.msra.mxu0 %v1708
    %2419 = vmatpush.bf16.msra.mxu0 %v1704
    %2420 = vmatpush.bf16.msra.mxu0 %v1700
    %2421 = vmatpush.bf16.msra.mxu0 %v1696
    %2422 = vmatmul.bf16.gmra.mxu0 %v653
    %v2423 = vpop.f32.mrf.mxu0
    %v2424 = vadd.f32 %v920, %v2423
    %v2425 = vpop.f32.mrf.mxu0
    %2426 = vdwg.mxu0
    %2427 = vmatpush.bf16.msra.mxu0 %v1756
    %2428 = vmatpush.bf16.msra.mxu0 %v1752
    %2429 = vmatpush.bf16.msra.mxu0 %v1748
    %2430 = vmatpush.bf16.msra.mxu0 %v1744
    %2431 = vmatpush.bf16.msra.mxu0 %v1740
    %2432 = vmatpush.bf16.msra.mxu0 %v1736
    %2433 = vmatpush.bf16.msra.mxu0 %v1732
    %2434 = vmatpush.bf16.msra.mxu0 %v1728
    %2435 = vmatmul.bf16.gmra.mxu0 %v654
    %v2436 = vpop.f32.mrf.mxu0
    %v2437 = vadd.f32 %v2424, %v2436
    %v2438 = vpop.f32.mrf.mxu0
    %2439 = vdwg.mxu0
    %2440 = vmatpush.bf16.msra.mxu0 %v1788
    %2441 = vmatpush.bf16.msra.mxu0 %v1784
    %2442 = vmatpush.bf16.msra.mxu0 %v1780
    %2443 = vmatpush.bf16.msra.mxu0 %v1776
    %2444 = vmatpush.bf16.msra.mxu0 %v1772
    %2445 = vmatpush.bf16.msra.mxu0 %v1768
    %2446 = vmatpush.bf16.msra.mxu0 %v1764
    %2447 = vmatpush.bf16.msra.mxu0 %v1760
    %2448 = vmatmul.bf16.gmra.mxu0 %v655
    %v2449 = vpop.f32.mrf.mxu0
    %v2450 = vadd.f32 %v2437, %v2449
    %v2451 = vpop.f32.mrf.mxu0
    %2452 = vdwg.mxu0
    %2453 = vmatpush.bf16.msra.mxu0 %v1820
    %2454 = vmatpush.bf16.msra.mxu0 %v1816
    %2455 = vmatpush.bf16.msra.mxu0 %v1812
    %2456 = vmatpush.bf16.msra.mxu0 %v1808
    %2457 = vmatpush.bf16.msra.mxu0 %v1804
    %2458 = vmatpush.bf16.msra.mxu0 %v1800
    %2459 = vmatpush.bf16.msra.mxu0 %v1796
    %2460 = vmatpush.bf16.msra.mxu0 %v1792
    %2461 = vmatmul.bf16.gmra.mxu0 %v656
    %v2462 = vpop.f32.mrf.mxu0
    %v2463 = vadd.f32 %v2450, %v2462
    %v2464 = vpop.f32.mrf.mxu0
    %2465 = vdwg.mxu0
    %2466 = vmatpush.bf16.msra.mxu0 %v1852
    %2467 = vmatpush.bf16.msra.mxu0 %v1848
    %2468 = vmatpush.bf16.msra.mxu0 %v1844
    %2469 = vmatpush.bf16.msra.mxu0 %v1840
    %2470 = vmatpush.bf16.msra.mxu0 %v1836
    %2471 = vmatpush.bf16.msra.mxu0 %v1832
    %2472 = vmatpush.bf16.msra.mxu0 %v1828
    %2473 = vmatpush.bf16.msra.mxu0 %v1824
    %2474 = vmatmul.bf16.gmra.mxu0 %v657
    %v2475 = vpop.f32.mrf.mxu0
    %v2476 = vadd.f32 %v2463, %v2475
    %v2477 = vpop.f32.mrf.mxu0
    %2478 = vdwg.mxu0
    %2479 = vmatpush.bf16.msra.mxu0 %v1884
    %2480 = vmatpush.bf16.msra.mxu0 %v1880
    %2481 = vmatpush.bf16.msra.mxu0 %v1876
    %2482 = vmatpush.bf16.msra.mxu0 %v1872
    %2483 = vmatpush.bf16.msra.mxu0 %v1868
    %2484 = vmatpush.bf16.msra.mxu0 %v1864
    %2485 = vmatpush.bf16.msra.mxu0 %v1860
    %2486 = vmatpush.bf16.msra.mxu0 %v1856
    %2487 = vmatmul.bf16.gmra.mxu0 %v658
    %v2488 = vpop.f32.mrf.mxu0
    %v2489 = vadd.f32 %v2476, %v2488
    %v2490 = vpop.f32.mrf.mxu0
    %2491 = vdwg.mxu0
    %2492 = vmatpush.bf16.msra.mxu0 %v1916
    %2493 = vmatpush.bf16.msra.mxu0 %v1912
    %2494 = vmatpush.bf16.msra.mxu0 %v1908
    %2495 = vmatpush.bf16.msra.mxu0 %v1904
    %2496 = vmatpush.bf16.msra.mxu0 %v1900
    %2497 = vmatpush.bf16.msra.mxu0 %v1896
    %2498 = vmatpush.bf16.msra.mxu0 %v1892
    %2499 = vmatpush.bf16.msra.mxu0 %v1888
    %2500 = vmatmul.bf16.gmra.mxu0 %v659
    %v2501 = vpop.f32.mrf.mxu0
    %v2502 = vadd.f32 %v2489, %v2501
    %v2503 = vpop.f32.mrf.mxu0
    %2504 = vdwg.mxu0
    %2505 = vmatpush.bf16.msra.mxu0 %v1948
    %2506 = vmatpush.bf16.msra.mxu0 %v1944
    %2507 = vmatpush.bf16.msra.mxu0 %v1940
    %2508 = vmatpush.bf16.msra.mxu0 %v1936
    %2509 = vmatpush.bf16.msra.mxu0 %v1932
    %2510 = vmatpush.bf16.msra.mxu0 %v1928
    %2511 = vmatpush.bf16.msra.mxu0 %v1924
    %2512 = vmatpush.bf16.msra.mxu0 %v1920
    %2513 = vmatmul.bf16.gmra.mxu0 %v660
    %v2514 = vpop.f32.mrf.mxu0
    %v2515 = vadd.f32 %v2502, %v2514
    %v2516 = vpop.f32.mrf.mxu0
    %2517 = vdwg.mxu0
    %2518 = vmatpush.bf16.msra.mxu0 %v1725
    %2519 = vmatpush.bf16.msra.mxu0 %v1721
    %2520 = vmatpush.bf16.msra.mxu0 %v1717
    %2521 = vmatpush.bf16.msra.mxu0 %v1713
    %2522 = vmatpush.bf16.msra.mxu0 %v1709
    %2523 = vmatpush.bf16.msra.mxu0 %v1705
    %2524 = vmatpush.bf16.msra.mxu0 %v1701
    %2525 = vmatpush.bf16.msra.mxu0 %v1697
    %2526 = vmatmul.bf16.gmra.mxu0 %v653
    %v2527 = vpop.f32.mrf.mxu0
    %v2528 = vadd.f32 %v921, %v2527
    %v2529 = vpop.f32.mrf.mxu0
    %2530 = vdwg.mxu0
    %2531 = vmatpush.bf16.msra.mxu0 %v1757
    %2532 = vmatpush.bf16.msra.mxu0 %v1753
    %2533 = vmatpush.bf16.msra.mxu0 %v1749
    %2534 = vmatpush.bf16.msra.mxu0 %v1745
    %2535 = vmatpush.bf16.msra.mxu0 %v1741
    %2536 = vmatpush.bf16.msra.mxu0 %v1737
    %2537 = vmatpush.bf16.msra.mxu0 %v1733
    %2538 = vmatpush.bf16.msra.mxu0 %v1729
    %2539 = vmatmul.bf16.gmra.mxu0 %v654
    %v2540 = vpop.f32.mrf.mxu0
    %v2541 = vadd.f32 %v2528, %v2540
    %v2542 = vpop.f32.mrf.mxu0
    %2543 = vdwg.mxu0
    %2544 = vmatpush.bf16.msra.mxu0 %v1789
    %2545 = vmatpush.bf16.msra.mxu0 %v1785
    %2546 = vmatpush.bf16.msra.mxu0 %v1781
    %2547 = vmatpush.bf16.msra.mxu0 %v1777
    %2548 = vmatpush.bf16.msra.mxu0 %v1773
    %2549 = vmatpush.bf16.msra.mxu0 %v1769
    %2550 = vmatpush.bf16.msra.mxu0 %v1765
    %2551 = vmatpush.bf16.msra.mxu0 %v1761
    %2552 = vmatmul.bf16.gmra.mxu0 %v655
    %v2553 = vpop.f32.mrf.mxu0
    %v2554 = vadd.f32 %v2541, %v2553
    %v2555 = vpop.f32.mrf.mxu0
    %2556 = vdwg.mxu0
    %2557 = vmatpush.bf16.msra.mxu0 %v1821
    %2558 = vmatpush.bf16.msra.mxu0 %v1817
    %2559 = vmatpush.bf16.msra.mxu0 %v1813
    %2560 = vmatpush.bf16.msra.mxu0 %v1809
    %2561 = vmatpush.bf16.msra.mxu0 %v1805
    %2562 = vmatpush.bf16.msra.mxu0 %v1801
    %2563 = vmatpush.bf16.msra.mxu0 %v1797
    %2564 = vmatpush.bf16.msra.mxu0 %v1793
    %2565 = vmatmul.bf16.gmra.mxu0 %v656
    %v2566 = vpop.f32.mrf.mxu0
    %v2567 = vadd.f32 %v2554, %v2566
    %v2568 = vpop.f32.mrf.mxu0
    %2569 = vdwg.mxu0
    %2570 = vmatpush.bf16.msra.mxu0 %v1853
    %2571 = vmatpush.bf16.msra.mxu0 %v1849
    %2572 = vmatpush.bf16.msra.mxu0 %v1845
    %2573 = vmatpush.bf16.msra.mxu0 %v1841
    %2574 = vmatpush.bf16.msra.mxu0 %v1837
    %2575 = vmatpush.bf16.msra.mxu0 %v1833
    %2576 = vmatpush.bf16.msra.mxu0 %v1829
    %2577 = vmatpush.bf16.msra.mxu0 %v1825
    %2578 = vmatmul.bf16.gmra.mxu0 %v657
    %v2579 = vpop.f32.mrf.mxu0
    %v2580 = vadd.f32 %v2567, %v2579
    %v2581 = vpop.f32.mrf.mxu0
    %2582 = vdwg.mxu0
    %2583 = vmatpush.bf16.msra.mxu0 %v1885
    %2584 = vmatpush.bf16.msra.mxu0 %v1881
    %2585 = vmatpush.bf16.msra.mxu0 %v1877
    %2586 = vmatpush.bf16.msra.mxu0 %v1873
    %2587 = vmatpush.bf16.msra.mxu0 %v1869
    %2588 = vmatpush.bf16.msra.mxu0 %v1865
    %2589 = vmatpush.bf16.msra.mxu0 %v1861
    %2590 = vmatpush.bf16.msra.mxu0 %v1857
    %2591 = vmatmul.bf16.gmra.mxu0 %v658
    %v2592 = vpop.f32.mrf.mxu0
    %v2593 = vadd.f32 %v2580, %v2592
    %v2594 = vpop.f32.mrf.mxu0
    %2595 = vdwg.mxu0
    %2596 = vmatpush.bf16.msra.mxu0 %v1917
    %2597 = vmatpush.bf16.msra.mxu0 %v1913
    %2598 = vmatpush.bf16.msra.mxu0 %v1909
    %2599 = vmatpush.bf16.msra.mxu0 %v1905
    %2600 = vmatpush.bf16.msra.mxu0 %v1901
    %2601 = vmatpush.bf16.msra.mxu0 %v1897
    %2602 = vmatpush.bf16.msra.mxu0 %v1893
    %2603 = vmatpush.bf16.msra.mxu0 %v1889
    %2604 = vmatmul.bf16.gmra.mxu0 %v659
    %v2605 = vpop.f32.mrf.mxu0
    %v2606 = vadd.f32 %v2593, %v2605
    %v2607 = vpop.f32.mrf.mxu0
    %2608 = vdwg.mxu0
    %2609 = vmatpush.bf16.msra.mxu0 %v1949
    %2610 = vmatpush.bf16.msra.mxu0 %v1945
    %2611 = vmatpush.bf16.msra.mxu0 %v1941
    %2612 = vmatpush.bf16.msra.mxu0 %v1937
    %2613 = vmatpush.bf16.msra.mxu0 %v1933
    %2614 = vmatpush.bf16.msra.mxu0 %v1929
    %2615 = vmatpush.bf16.msra.mxu0 %v1925
    %2616 = vmatpush.bf16.msra.mxu0 %v1921
    %2617 = vmatmul.bf16.gmra.mxu0 %v660
    %v2618 = vpop.f32.mrf.mxu0
    %v2619 = vadd.f32 %v2606, %v2618
    %v2620 = vpop.f32.mrf.mxu0
    %2621 = vdwg.mxu0
    %vm2622 = vcmp.ge.f32.partialorder %v2307, 0.0
    %vm2623 = vcmp.ge.f32.partialorder %v2411, 0.0
    %vm2624 = vcmp.ge.f32.partialorder %v2515, 0.0
    %vm2625 = vcmp.ge.f32.partialorder %v2619, 0.0
    %v2626 = vmul.f32 %v2307, 0.2
    %v2627 = vmul.f32 %v2411, 0.2
    %v2628 = vmul.f32 %v2515, 0.2
    %v2629 = vmul.f32 %v2619, 0.2
    %v2630 = vsel %vm2622, %v2307, %v2626
    %v2631 = vsel %vm2623, %v2411, %v2627
    %v2632 = vsel %vm2624, %v2515, %v2628
    %v2633 = vsel %vm2625, %v2619, %v2629
    %v2634 = vrot.slane %v2630, 4
    %v2635 = vadd.f32 %v2630, %v2634
    %v2636 = vrot.slane %v2635, 2
    %v2637 = vadd.f32 %v2635, %v2636
    %v2638 = vrot.slane %v2637, 1
    %v2639 = vadd.f32 %v2637, %v2638
    %v2640 = vrot.slane %v2631, 4
    %v2641 = vadd.f32 %v2631, %v2640
    %v2642 = vrot.slane %v2641, 2
    %v2643 = vadd.f32 %v2641, %v2642
    %v2644 = vrot.slane %v2643, 1
    %v2645 = vadd.f32 %v2643, %v2644
    %v2646 = vrot.slane %v2632, 4
    %v2647 = vadd.f32 %v2632, %v2646
    %v2648 = vrot.slane %v2647, 2
    %v2649 = vadd.f32 %v2647, %v2648
    %v2650 = vrot.slane %v2649, 1
    %v2651 = vadd.f32 %v2649, %v2650
    %v2652 = vrot.slane %v2633, 4
    %v2653 = vadd.f32 %v2633, %v2652
    %v2654 = vrot.slane %v2653, 2
    %v2655 = vadd.f32 %v2653, %v2654
    %v2656 = vrot.slane %v2655, 1
    %v2657 = vadd.f32 %v2655, %v2656
    %v2658 = vmul.f32 %v2639, %v475
    %v2659 = vmul.f32 %v2645, %v475
    %v2660 = vmul.f32 %v2651, %v475
    %v2661 = vmul.f32 %v2657, %v475
    %v2662 = vsub.f32 %v2630, %v2658
    %v2663 = vsub.f32 %v2631, %v2659
    %v2664 = vsub.f32 %v2632, %v2660
    %v2665 = vsub.f32 %v2633, %v2661
    %v2666 = vmul.f32 %v2662, %v2662
    %v2667 = vmul.f32 %v2663, %v2663
    %v2668 = vmul.f32 %v2664, %v2664
    %v2669 = vmul.f32 %v2665, %v2665
    %v2670 = vrot.slane %v2666, 4
    %v2671 = vadd.f32 %v2666, %v2670
    %v2672 = vrot.slane %v2671, 2
    %v2673 = vadd.f32 %v2671, %v2672
    %v2674 = vrot.slane %v2673, 1
    %v2675 = vadd.f32 %v2673, %v2674
    %v2676 = vrot.slane %v2667, 4
    %v2677 = vadd.f32 %v2667, %v2676
    %v2678 = vrot.slane %v2677, 2
    %v2679 = vadd.f32 %v2677, %v2678
    %v2680 = vrot.slane %v2679, 1
    %v2681 = vadd.f32 %v2679, %v2680
    %v2682 = vrot.slane %v2668, 4
    %v2683 = vadd.f32 %v2668, %v2682
    %v2684 = vrot.slane %v2683, 2
    %v2685 = vadd.f32 %v2683, %v2684
    %v2686 = vrot.slane %v2685, 1
    %v2687 = vadd.f32 %v2685, %v2686
    %v2688 = vrot.slane %v2669, 4
    %v2689 = vadd.f32 %v2669, %v2688
    %v2690 = vrot.slane %v2689, 2
    %v2691 = vadd.f32 %v2689, %v2690
    %v2692 = vrot.slane %v2691, 1
    %v2693 = vadd.f32 %v2691, %v2692
    %v2694 = vmul.f32 %v2675, %v475
    %v2695 = vmul.f32 %v2681, %v475
    %v2696 = vmul.f32 %v2687, %v475
    %v2697 = vmul.f32 %v2693, %v475
    %v2698 = vadd.f32 %v2694, 1e-05
    %v2699 = vadd.f32 %v2695, 1e-05
    %v2700 = vadd.f32 %v2696, 1e-05
    %v2701 = vadd.f32 %v2697, 1e-05
    %v2702 = vrsqrt.pop %v2698
    %v2703 = vmul.f32 %v2702, %v2698
    %v2704 = vmul.f32 %v2703, %v2702
    %v2705 = vmul.f32 0.5, %v2704
    %v2706 = vsub.f32 1.5, %v2705
    %v2707 = vmul.f32 %v2702, %v2706
    %vm2708 = vweird.f32 %v2698
    %vm2709 = vweird.f32 %v2702
    %vm2710 = vmor %vm2708, %vm2709
    %v2711 = vsel %vm2710, %v2702, %v2707
    %v2712 = vrsqrt.pop %v2699
    %v2713 = vmul.f32 %v2712, %v2699
    %v2714 = vmul.f32 %v2713, %v2712
    %v2715 = vmul.f32 0.5, %v2714
    %v2716 = vsub.f32 1.5, %v2715
    %v2717 = vmul.f32 %v2712, %v2716
    %vm2718 = vweird.f32 %v2699
    %vm2719 = vweird.f32 %v2712
    %vm2720 = vmor %vm2718, %vm2719
    %v2721 = vsel %vm2720, %v2712, %v2717
    %v2722 = vrsqrt.pop %v2700
    %v2723 = vmul.f32 %v2722, %v2700
    %v2724 = vmul.f32 %v2723, %v2722
    %v2725 = vmul.f32 0.5, %v2724
    %v2726 = vsub.f32 1.5, %v2725
    %v2727 = vmul.f32 %v2722, %v2726
    %vm2728 = vweird.f32 %v2700
    %vm2729 = vweird.f32 %v2722
    %vm2730 = vmor %vm2728, %vm2729
    %v2731 = vsel %vm2730, %v2722, %v2727
    %v2732 = vrsqrt.pop %v2701
    %v2733 = vmul.f32 %v2732, %v2701
    %v2734 = vmul.f32 %v2733, %v2732
    %v2735 = vmul.f32 0.5, %v2734
    %v2736 = vsub.f32 1.5, %v2735
    %v2737 = vmul.f32 %v2732, %v2736
    %vm2738 = vweird.f32 %v2701
    %vm2739 = vweird.f32 %v2732
    %vm2740 = vmor %vm2738, %vm2739
    %v2741 = vsel %vm2740, %v2732, %v2737
    %v2742 = vmul.f32 %v2662, %v2711
    %v2743 = vmul.f32 %v2663, %v2721
    %v2744 = vmul.f32 %v2664, %v2731
    %v2745 = vmul.f32 %v2665, %v2741
    %v2746 = vld [vmem:[%s7 + $0xc] sm:$0x1]
    %v2747 = vpack.c.bf16 %v2742, %v2742
    %v2748 = vpack.c.bf16 %v2743, %v2743
    %v2749 = vpack.c.bf16 %v2744, %v2744
    %v2750 = vpack.c.bf16 %v2745, %v2745
    %v2751 = vld [vmem:[#allocation6] sm:$0xf]
    %v2752 = vld [vmem:[#allocation6 + $0x4] sm:$0xf]
    %v2753 = vld [vmem:[#allocation6 + $0x8] sm:$0xf]
    %v2754 = vld [vmem:[#allocation6 + $0xc] sm:$0xf]
    %v2755 = vld [vmem:[#allocation6 + $0x10] sm:$0xf]
    %v2756 = vld [vmem:[#allocation6 + $0x14] sm:$0xf]
    %v2757 = vld [vmem:[#allocation6 + $0x18] sm:$0xf]
    %v2758 = vld [vmem:[#allocation6 + $0x1c] sm:$0xf]
    %v2759 = vld [vmem:[#allocation6 + $0x20] sm:$0xf]
    %v2760 = vld [vmem:[#allocation6 + $0x24] sm:$0xf]
    %v2761 = vld [vmem:[#allocation6 + $0x28] sm:$0xf]
    %v2762 = vld [vmem:[#allocation6 + $0x2c] sm:$0xf]
    %v2763 = vld [vmem:[#allocation6 + $0x30] sm:$0xf]
    %v2764 = vld [vmem:[#allocation6 + $0x34] sm:$0xf]
    %v2765 = vld [vmem:[#allocation6 + $0x38] sm:$0xf]
    %v2766 = vld [vmem:[#allocation6 + $0x3c] sm:$0xf]
    %v2767 = vld [vmem:[#allocation6 + $0x40] sm:$0xf]
    %v2768 = vld [vmem:[#allocation6 + $0x44] sm:$0xf]
    %v2769 = vld [vmem:[#allocation6 + $0x48] sm:$0xf]
    %v2770 = vld [vmem:[#allocation6 + $0x4c] sm:$0xf]
    %v2771 = vld [vmem:[#allocation6 + $0x50] sm:$0xf]
    %v2772 = vld [vmem:[#allocation6 + $0x54] sm:$0xf]
    %v2773 = vld [vmem:[#allocation6 + $0x58] sm:$0xf]
    %v2774 = vld [vmem:[#allocation6 + $0x5c] sm:$0xf]
    %v2775 = vld [vmem:[#allocation6 + $0x60] sm:$0xf]
    %v2776 = vld [vmem:[#allocation6 + $0x64] sm:$0xf]
    %v2777 = vld [vmem:[#allocation6 + $0x68] sm:$0xf]
    %v2778 = vld [vmem:[#allocation6 + $0x6c] sm:$0xf]
    %v2779 = vld [vmem:[#allocation6 + $0x70] sm:$0xf]
    %v2780 = vld [vmem:[#allocation6 + $0x74] sm:$0xf]
    %v2781 = vld [vmem:[#allocation6 + $0x78] sm:$0xf]
    %v2782 = vld [vmem:[#allocation6 + $0x7c] sm:$0xf]
    %v2783 = vld [vmem:[#allocation6 + $0x80] sm:$0xf]
    %v2784 = vld [vmem:[#allocation6 + $0x84] sm:$0xf]
    %v2785 = vld [vmem:[#allocation6 + $0x88] sm:$0xf]
    %v2786 = vld [vmem:[#allocation6 + $0x8c] sm:$0xf]
    %v2787 = vld [vmem:[#allocation6 + $0x90] sm:$0xf]
    %v2788 = vld [vmem:[#allocation6 + $0x94] sm:$0xf]
    %v2789 = vld [vmem:[#allocation6 + $0x98] sm:$0xf]
    %v2790 = vld [vmem:[#allocation6 + $0x9c] sm:$0xf]
    %v2791 = vld [vmem:[#allocation6 + $0xa0] sm:$0xf]
    %v2792 = vld [vmem:[#allocation6 + $0xa4] sm:$0xf]
    %v2793 = vld [vmem:[#allocation6 + $0xa8] sm:$0xf]
    %v2794 = vld [vmem:[#allocation6 + $0xac] sm:$0xf]
    %v2795 = vld [vmem:[#allocation6 + $0xb0] sm:$0xf]
    %v2796 = vld [vmem:[#allocation6 + $0xb4] sm:$0xf]
    %v2797 = vld [vmem:[#allocation6 + $0xb8] sm:$0xf]
    %v2798 = vld [vmem:[#allocation6 + $0xbc] sm:$0xf]
    %v2799 = vld [vmem:[#allocation6 + $0xc0] sm:$0xf]
    %v2800 = vld [vmem:[#allocation6 + $0xc4] sm:$0xf]
    %v2801 = vld [vmem:[#allocation6 + $0xc8] sm:$0xf]
    %v2802 = vld [vmem:[#allocation6 + $0xcc] sm:$0xf]
    %v2803 = vld [vmem:[#allocation6 + $0xd0] sm:$0xf]
    %v2804 = vld [vmem:[#allocation6 + $0xd4] sm:$0xf]
    %v2805 = vld [vmem:[#allocation6 + $0xd8] sm:$0xf]
    %v2806 = vld [vmem:[#allocation6 + $0xdc] sm:$0xf]
    %v2807 = vld [vmem:[#allocation6 + $0xe0] sm:$0xf]
    %v2808 = vld [vmem:[#allocation6 + $0xe4] sm:$0xf]
    %v2809 = vld [vmem:[#allocation6 + $0xe8] sm:$0xf]
    %v2810 = vld [vmem:[#allocation6 + $0xec] sm:$0xf]
    %v2811 = vld [vmem:[#allocation6 + $0xf0] sm:$0xf]
    %v2812 = vld [vmem:[#allocation6 + $0xf4] sm:$0xf]
    %v2813 = vld [vmem:[#allocation6 + $0xf8] sm:$0xf]
    %v2814 = vld [vmem:[#allocation6 + $0xfc] sm:$0xf]
    %v2816 = vperm.slane %v2746, 0
    %v2882 = vunpack.c.l.b16 %v2751
    %v2883 = vunpack.c.l.b16 %v2752
    %v2884 = vunpack.c.l.b16 %v2753
    %v2885 = vunpack.c.l.b16 %v2754
    %v2886 = vunpack.c.l.b16 %v2755
    %v2887 = vunpack.c.l.b16 %v2756
    %v2888 = vunpack.c.l.b16 %v2757
    %v2889 = vunpack.c.l.b16 %v2758
    %v2890 = vunpack.c.l.b16 %v2759
    %v2891 = vunpack.c.l.b16 %v2760
    %v2892 = vunpack.c.l.b16 %v2761
    %v2893 = vunpack.c.l.b16 %v2762
    %v2894 = vunpack.c.l.b16 %v2763
    %v2895 = vunpack.c.l.b16 %v2764
    %v2896 = vunpack.c.l.b16 %v2765
    %v2897 = vunpack.c.l.b16 %v2766
    %v2898 = vunpack.c.l.b16 %v2767
    %v2899 = vunpack.c.l.b16 %v2768
    %v2900 = vunpack.c.l.b16 %v2769
    %v2901 = vunpack.c.l.b16 %v2770
    %v2902 = vunpack.c.l.b16 %v2771
    %v2903 = vunpack.c.l.b16 %v2772
    %v2904 = vunpack.c.l.b16 %v2773
    %v2905 = vunpack.c.l.b16 %v2774
    %v2906 = vunpack.c.l.b16 %v2775
    %v2907 = vunpack.c.l.b16 %v2776
    %v2908 = vunpack.c.l.b16 %v2777
    %v2909 = vunpack.c.l.b16 %v2778
    %v2910 = vunpack.c.l.b16 %v2779
    %v2911 = vunpack.c.l.b16 %v2780
    %v2912 = vunpack.c.l.b16 %v2781
    %v2913 = vunpack.c.l.b16 %v2782
    %v2914 = vunpack.c.l.b16 %v2783
    %v2915 = vunpack.c.l.b16 %v2784
    %v2916 = vunpack.c.l.b16 %v2785
    %v2917 = vunpack.c.l.b16 %v2786
    %v2918 = vunpack.c.l.b16 %v2787
    %v2919 = vunpack.c.l.b16 %v2788
    %v2920 = vunpack.c.l.b16 %v2789
    %v2921 = vunpack.c.l.b16 %v2790
    %v2922 = vunpack.c.l.b16 %v2791
    %v2923 = vunpack.c.l.b16 %v2792
    %v2924 = vunpack.c.l.b16 %v2793
    %v2925 = vunpack.c.l.b16 %v2794
    %v2926 = vunpack.c.l.b16 %v2795
    %v2927 = vunpack.c.l.b16 %v2796
    %v2928 = vunpack.c.l.b16 %v2797
    %v2929 = vunpack.c.l.b16 %v2798
    %v2930 = vunpack.c.l.b16 %v2799
    %v2931 = vunpack.c.l.b16 %v2800
    %v2932 = vunpack.c.l.b16 %v2801
    %v2933 = vunpack.c.l.b16 %v2802
    %v2934 = vunpack.c.l.b16 %v2803
    %v2935 = vunpack.c.l.b16 %v2804
    %v2936 = vunpack.c.l.b16 %v2805
    %v2937 = vunpack.c.l.b16 %v2806
    %v2938 = vunpack.c.l.b16 %v2807
    %v2939 = vunpack.c.l.b16 %v2808
    %v2940 = vunpack.c.l.b16 %v2809
    %v2941 = vunpack.c.l.b16 %v2810
    %v2942 = vunpack.c.l.b16 %v2811
    %v2943 = vunpack.c.l.b16 %v2812
    %v2944 = vunpack.c.l.b16 %v2813
    %v2945 = vunpack.c.l.b16 %v2814
    %v2946 = vpack.c.b16 %v2883, %v2882
    %v2947 = vpack.c.b16 %v2885, %v2884
    %v2948 = vpack.c.b16 %v2887, %v2886
    %v2949 = vpack.c.b16 %v2889, %v2888
    %v2950 = vpack.c.b16 %v2891, %v2890
    %v2951 = vpack.c.b16 %v2893, %v2892
    %v2952 = vpack.c.b16 %v2895, %v2894
    %v2953 = vpack.c.b16 %v2897, %v2896
    %v2954 = vpack.c.b16 %v2899, %v2898
    %v2955 = vpack.c.b16 %v2901, %v2900
    %v2956 = vpack.c.b16 %v2903, %v2902
    %v2957 = vpack.c.b16 %v2905, %v2904
    %v2958 = vpack.c.b16 %v2907, %v2906
    %v2959 = vpack.c.b16 %v2909, %v2908
    %v2960 = vpack.c.b16 %v2911, %v2910
    %v2961 = vpack.c.b16 %v2913, %v2912
    %v2962 = vpack.c.b16 %v2915, %v2914
    %v2963 = vpack.c.b16 %v2917, %v2916
    %v2964 = vpack.c.b16 %v2919, %v2918
    %v2965 = vpack.c.b16 %v2921, %v2920
    %v2966 = vpack.c.b16 %v2923, %v2922
    %v2967 = vpack.c.b16 %v2925, %v2924
    %v2968 = vpack.c.b16 %v2927, %v2926
    %v2969 = vpack.c.b16 %v2929, %v2928
    %v2970 = vpack.c.b16 %v2931, %v2930
    %v2971 = vpack.c.b16 %v2933, %v2932
    %v2972 = vpack.c.b16 %v2935, %v2934
    %v2973 = vpack.c.b16 %v2937, %v2936
    %v2974 = vpack.c.b16 %v2939, %v2938
    %v2975 = vpack.c.b16 %v2941, %v2940
    %v2976 = vpack.c.b16 %v2943, %v2942
    %v2977 = vpack.c.b16 %v2945, %v2944
    %3010 = vmatpush.bf16.msra.mxu0 %v2953
    %3011 = vmatpush.bf16.msra.mxu0 %v2952
    %3012 = vmatpush.bf16.msra.mxu0 %v2951
    %3013 = vmatpush.bf16.msra.mxu0 %v2950
    %3014 = vmatpush.bf16.msra.mxu0 %v2949
    %3015 = vmatpush.bf16.msra.mxu0 %v2948
    %3016 = vmatpush.bf16.msra.mxu0 %v2947
    %3017 = vmatpush.bf16.msra.mxu0 %v2946
    %3018 = vmatmul.bf16.gmra.mxu0 %v2747
    %v3019 = vpop.f32.mrf.mxu0
    %v3020 = vadd.f32 %v2816, %v3019
    %v3021 = vpop.f32.mrf.mxu0
    %3022 = vdwg.mxu0
    %3023 = vmatpush.bf16.msra.mxu0 %v2961
    %3024 = vmatpush.bf16.msra.mxu0 %v2960
    %3025 = vmatpush.bf16.msra.mxu0 %v2959
    %3026 = vmatpush.bf16.msra.mxu0 %v2958
    %3027 = vmatpush.bf16.msra.mxu0 %v2957
    %3028 = vmatpush.bf16.msra.mxu0 %v2956
    %3029 = vmatpush.bf16.msra.mxu0 %v2955
    %3030 = vmatpush.bf16.msra.mxu0 %v2954
    %3031 = vmatmul.bf16.gmra.mxu0 %v2748
    %v3032 = vpop.f32.mrf.mxu0
    %v3033 = vadd.f32 %v3020, %v3032
    %v3034 = vpop.f32.mrf.mxu0
    %3035 = vdwg.mxu0
    %3036 = vmatpush.bf16.msra.mxu0 %v2969
    %3037 = vmatpush.bf16.msra.mxu0 %v2968
    %3038 = vmatpush.bf16.msra.mxu0 %v2967
    %3039 = vmatpush.bf16.msra.mxu0 %v2966
    %3040 = vmatpush.bf16.msra.mxu0 %v2965
    %3041 = vmatpush.bf16.msra.mxu0 %v2964
    %3042 = vmatpush.bf16.msra.mxu0 %v2963
    %3043 = vmatpush.bf16.msra.mxu0 %v2962
    %3044 = vmatmul.bf16.gmra.mxu0 %v2749
    %v3045 = vpop.f32.mrf.mxu0
    %v3046 = vadd.f32 %v3033, %v3045
    %v3047 = vpop.f32.mrf.mxu0
    %3048 = vdwg.mxu0
    %3049 = vmatpush.bf16.msra.mxu0 %v2977
    %3050 = vmatpush.bf16.msra.mxu0 %v2976
    %3051 = vmatpush.bf16.msra.mxu0 %v2975
    %3052 = vmatpush.bf16.msra.mxu0 %v2974
    %3053 = vmatpush.bf16.msra.mxu0 %v2973
    %3054 = vmatpush.bf16.msra.mxu0 %v2972
    %3055 = vmatpush.bf16.msra.mxu0 %v2971
    %3056 = vmatpush.bf16.msra.mxu0 %v2970
    %3057 = vmatmul.bf16.gmra.mxu0 %v2750
    %v3058 = vpop.f32.mrf.mxu0
    %v3059 = vadd.f32 %v3046, %v3058
    %v3060 = vpop.f32.mrf.mxu0
    %3061 = vdwg.mxu0
    %vm3062 = vcmp.ge.f32.partialorder %v3059, 0.0
    %v3063 = vmul.f32 %v3059, 0.2
    %v3064 = vsel %vm3062, %v3059, %v3063
    %v3065 = vrot.slane %v3064, 4
    %v3066 = vadd.f32 %v3064, %v3065
    %v3067 = vrot.slane %v3066, 2
    %v3068 = vadd.f32 %v3066, %v3067
    %v3069 = vrot.slane %v3068, 1
    %v3070 = vadd.f32 %v3068, %v3069
    %v3071 = vmul.f32 %v3070, %v475
    %v3072 = vsub.f32 %v3064, %v3071
    %v3073 = vmul.f32 %v3072, %v3072
    %v3074 = vrot.slane %v3073, 4
    %v3075 = vadd.f32 %v3073, %v3074
    %v3076 = vrot.slane %v3075, 2
    %v3077 = vadd.f32 %v3075, %v3076
    %v3078 = vrot.slane %v3077, 1
    %v3079 = vadd.f32 %v3077, %v3078
    %v3080 = vmul.f32 %v3079, %v475
    %v3081 = vadd.f32 %v3080, 1e-05
    %v3082 = vrsqrt.pop %v3081
    %v3083 = vmul.f32 %v3082, %v3081
    %v3084 = vmul.f32 %v3083, %v3082
    %v3085 = vmul.f32 0.5, %v3084
    %v3086 = vsub.f32 1.5, %v3085
    %v3087 = vmul.f32 %v3082, %v3086
    %vm3088 = vweird.f32 %v3081
    %vm3089 = vweird.f32 %v3082
    %vm3090 = vmor %vm3088, %vm3089
    %v3091 = vsel %vm3090, %v3082, %v3087
    %v3092 = vmul.f32 %v3072, %v3091
    %v3093 = vld [vmem:[%s7 + $0xd] sm:$0x1]
    %v3094 = vpack.c.bf16 %v3092, %v3092
    %v3095 = vld [vmem:[%s4] sm:$0xf]
    %v3096 = vld [vmem:[%s4 + $0x4] sm:$0xf]
    %v3097 = vld [vmem:[%s4 + $0x8] sm:$0xf]
    %v3098 = vld [vmem:[%s4 + $0xc] sm:$0xf]
    %v3099 = vld [vmem:[%s4 + $0x10] sm:$0xf]
    %v3100 = vld [vmem:[%s4 + $0x14] sm:$0xf]
    %v3101 = vld [vmem:[%s4 + $0x18] sm:$0xf]
    %v3102 = vld [vmem:[%s4 + $0x1c] sm:$0xf]
    %v3103 = vld [vmem:[%s4 + $0x20] sm:$0xf]
    %v3104 = vld [vmem:[%s4 + $0x24] sm:$0xf]
    %v3105 = vld [vmem:[%s4 + $0x28] sm:$0xf]
    %v3106 = vld [vmem:[%s4 + $0x2c] sm:$0xf]
    %v3107 = vld [vmem:[%s4 + $0x30] sm:$0xf]
    %v3108 = vld [vmem:[%s4 + $0x34] sm:$0xf]
    %v3109 = vld [vmem:[%s4 + $0x38] sm:$0xf]
    %v3110 = vld [vmem:[%s4 + $0x3c] sm:$0xf]
    %v3112 = vperm.slane %v3093, 0
    %v3130 = vunpack.c.l.b16 %v3095
    %v3131 = vunpack.c.l.b16 %v3096
    %v3132 = vunpack.c.l.b16 %v3097
    %v3133 = vunpack.c.l.b16 %v3098
    %v3134 = vunpack.c.l.b16 %v3099
    %v3135 = vunpack.c.l.b16 %v3100
    %v3136 = vunpack.c.l.b16 %v3101
    %v3137 = vunpack.c.l.b16 %v3102
    %v3138 = vunpack.c.l.b16 %v3103
    %v3139 = vunpack.c.l.b16 %v3104
    %v3140 = vunpack.c.l.b16 %v3105
    %v3141 = vunpack.c.l.b16 %v3106
    %v3142 = vunpack.c.l.b16 %v3107
    %v3143 = vunpack.c.l.b16 %v3108
    %v3144 = vunpack.c.l.b16 %v3109
    %v3145 = vunpack.c.l.b16 %v3110
    %v3146 = vpack.c.b16 %v3131, %v3130
    %v3147 = vpack.c.b16 %v3133, %v3132
    %v3148 = vpack.c.b16 %v3135, %v3134
    %v3149 = vpack.c.b16 %v3137, %v3136
    %v3150 = vpack.c.b16 %v3139, %v3138
    %v3151 = vpack.c.b16 %v3141, %v3140
    %v3152 = vpack.c.b16 %v3143, %v3142
    %v3153 = vpack.c.b16 %v3145, %v3144
    %3162 = vmatpush.bf16.msra.mxu0 %v3153
    %3163 = vmatpush.bf16.msra.mxu0 %v3152
    %3164 = vmatpush.bf16.msra.mxu0 %v3151
    %3165 = vmatpush.bf16.msra.mxu0 %v3150
    %3166 = vmatpush.bf16.msra.mxu0 %v3149
    %3167 = vmatpush.bf16.msra.mxu0 %v3148
    %3168 = vmatpush.bf16.msra.mxu0 %v3147
    %3169 = vmatpush.bf16.msra.mxu0 %v3146
    %3170 = vmatmul.bf16.gmra.mxu0 %v3094
    %v3171 = vpop.f32.mrf.mxu0
    %v3172 = vadd.f32 %v3112, %v3171
    %v3173 = vpop.f32.mrf.mxu0
    %3174 = vdwg.mxu0
    %vm3175 = vcmp.ge.f32.partialorder %v3172, 0.0
    %v3176 = vmul.f32 %v3172, 0.2
    %v3177 = vsel %vm3175, %v3172, %v3176
    %vm3178 = vcmask 261120
    %v3179 = vsel %vm3178, %v3177, 0.0
    %v3180 = vrot.slane %v3179, 4
    %v3181 = vadd.f32 %v3179, %v3180
    %v3182 = vrot.slane %v3181, 2
    %v3183 = vadd.f32 %v3181, %v3182
    %v3184 = vrot.slane %v3183, 1
    %v3185 = vadd.f32 %v3183, %v3184
    %v3186 = vmul.f32 %v3185, %v475
    %v3187 = vsub.f32 %v3177, %v3186
    %v3188 = vmul.f32 %v3187, %v3187
    %v3189 = vsel %vm3178, %v3188, 0.0
    %v3190 = vrot.slane %v3189, 4
    %v3191 = vadd.f32 %v3189, %v3190
    %v3192 = vrot.slane %v3191, 2
    %v3193 = vadd.f32 %v3191, %v3192
    %v3194 = vrot.slane %v3193, 1
    %v3195 = vadd.f32 %v3193, %v3194
    %v3196 = vmul.f32 %v3195, %v475
    %v3197 = vadd.f32 %v3196, 1e-05
    %v3198 = vrsqrt.pop %v3197
    %v3199 = vmul.f32 %v3198, %v3197
    %v3200 = vmul.f32 %v3199, %v3198
    %v3201 = vmul.f32 0.5, %v3200
    %v3202 = vsub.f32 1.5, %v3201
    %v3203 = vmul.f32 %v3198, %v3202
    %vm3204 = vweird.f32 %v3197
    %vm3205 = vweird.f32 %v3198
    %vm3206 = vmor %vm3204, %vm3205
    %v3207 = vsel %vm3206, %v3198, %v3203
    %v3208 = vmul.f32 %v3187, %v3207
    %v3209 = vld [vmem:[%s7 + $0xe] sm:$0x1]
    %v3210 = vpack.c.bf16 %v3208, %v3208
    %v3211 = vld [vmem:[%s5] sm:$0xf]
    %v3212 = vld [vmem:[%s5 + $0x4] sm:$0xf]
    %v3213 = vld [vmem:[%s5 + $0x8] sm:$0xf]
    %v3214 = vld [vmem:[%s5 + $0xc] sm:$0xf]
    %v3216 = vperm.slane %v3209, 0
    %v3222 = vunpack.c.l.b16 %v3211
    %v3223 = vunpack.c.l.b16 %v3212
    %v3224 = vunpack.c.l.b16 %v3213
    %v3225 = vunpack.c.l.b16 %v3214
    %v3226 = vpack.c.b16 %v3223, %v3222
    %v3227 = vpack.c.b16 %v3225, %v3224
    %v3231 = vsel %vm3178, %v3210, 0
    %3233 = vmatpush.bf16.msra.mxu0 0
    %3234 = vmatpush.bf16.msra.mxu0 0
    %3235 = vmatpush.bf16.msra.mxu0 0
    %3236 = vmatpush.bf16.msra.mxu0 0
    %3237 = vmatpush.bf16.msra.mxu0 0
    %3238 = vmatpush.bf16.msra.mxu0 0
    %3239 = vmatpush.bf16.msra.mxu0 %v3227
    %3240 = vmatpush.bf16.msra.mxu0 %v3226
    %3241 = vmatmul.bf16.gmra.mxu0 %v3231
    %v3242 = vpop.f32.mrf.mxu0
    %v3243 = vadd.f32 %v3216, %v3242
    %v3244 = vpop.f32.mrf.mxu0
    %3245 = vdwg.mxu0
    %vm3246 = vcmp.ge.f32.partialorder %v3243, 0.0
    %v3247 = vmul.f32 %v3243, 0.2
    %v3248 = vsel %vm3246, %v3243, %v3247
    %vm3249 = vcmask 130048
    %v3250 = vsel %vm3249, %v3248, 0.0
    %v3251 = vrot.slane %v3250, 4
    %v3252 = vadd.f32 %v3250, %v3251
    %v3253 = vrot.slane %v3252, 2
    %v3254 = vadd.f32 %v3252, %v3253
    %v3255 = vrot.slane %v3254, 1
    %v3256 = vadd.f32 %v3254, %v3255
    %v3257 = vmul.f32 %v3256, %v475
    %v3258 = vsub.f32 %v3248, %v3257
    %v3259 = vmul.f32 %v3258, %v3258
    %v3260 = vsel %vm3249, %v3259, 0.0
    %v3261 = vrot.slane %v3260, 4
    %v3262 = vadd.f32 %v3260, %v3261
    %v3263 = vrot.slane %v3262, 2
    %v3264 = vadd.f32 %v3262, %v3263
    %v3265 = vrot.slane %v3264, 1
    %v3266 = vadd.f32 %v3264, %v3265
    %v3267 = vmul.f32 %v3266, %v475
    %v3268 = vadd.f32 %v3267, 1e-05
    %v3269 = vrsqrt.pop %v3268
    %v3270 = vmul.f32 %v3269, %v3268
    %v3271 = vmul.f32 %v3270, %v3269
    %v3272 = vmul.f32 0.5, %v3271
    %v3273 = vsub.f32 1.5, %v3272
    %v3274 = vmul.f32 %v3269, %v3273
    %vm3275 = vweird.f32 %v3268
    %vm3276 = vweird.f32 %v3269
    %vm3277 = vmor %vm3275, %vm3276
    %v3278 = vsel %vm3277, %v3269, %v3274
    %v3279 = vmul.f32 %v3258, %v3278
    %v3280 = vld [vmem:[%s7 + $0xf] sm:$0x1]
    %v3281 = vld [vmem:[%s6] sm:$0x1]
    %v3283 = vperm.slane %v3281, 0
    %v3285 = vmul.f32 %v3279, %v3283
    %v3286 = vsel %vm3249, %v3285, 0.0
    %3287 = vadd.xlane.f32.xlu0 %v3286
    %v3288 = vpop.xlane.xlu0 %3287
    %v3290 = vperm.slane %v3280, 0
    %v3292 = vadd.f32 %v3288, %v3290
    %v3293 = vxor.u32 %v3292, 2147483648
    %v3294 = vmul.f32 %v3293, 1.442695
    %v3295 = vpow.pop %v3294
    %v3296 = vadd.f32 %v3295, 1.0
    %v3297 = vrcp.pop %v3296
    %v3298 = vmul.f32 %v3296, %v3297
    %v3299 = vsub.f32 1.0, %v3298
    %v3300 = vmul.f32 %v3297, %v3299
    %v3301 = vadd.f32 %v3297, %v3300
    %vm3302 = vweird.f32 %v3296
    %vm3303 = vweird.f32 %v3297
    %vm3304 = vmor %vm3302, %vm3303
    %v3305 = vsel %vm3304, %v3297, %v3301
    %v3306 = vand.u32 2147483647, %v3296
    %vm3307 = vcmp.eq.f32.partialorder %v3306, 8.507059e+37
    %v3308 = vand.u32 %v3296, 2147483648
    %v3309 = vor.u32 1.1754944e-38, %v3308
    %v3310 = vsel %vm3307, %v3309, %v3305
    %v3311 = vmul.f32 1.0, %v3310
    %vm3312 = vcmask 7168
    %3313 = vst.msk [vmem:[%s8] sm:$0xff] %vm3312, %v3311
    // Predicated region
    $region46: #{tpu_custom_call.1} parent=1 // pred_check
      _
    $region47: #{tpu_custom_call.1} parent=1 // pred_check_branch
      %3315 = sbr.rel (0) target = $region49
    $region48: #{tpu_custom_call.1} parent=1 // pred_region
      _
    $region49: #{tpu_custom_call.1} parent=1 // pred_fallthru
      _
    // Predicated region
    $region50: #{tpu_custom_call.1} parent=1 // pred_check
      _
    $region51: #{tpu_custom_call.1} parent=1 // pred_check_branch
      %3317 = sbr.rel (0) target = $region53
    $region52: #{tpu_custom_call.1} parent=1 // pred_region
      _
    $region53: #{tpu_custom_call.1} parent=1 // pred_fallthru
      _
    %3318 = vsyncpa [#allocation3], 1
    %3319 = vsyncpa [#allocation5], 1

</llo_original>
